<compile_context>
chip_gen: v5e
topology: v5e:2x2
jax: 0.10.0
libtpu: 0.0.40
codegen_flags: <defaults>
</compile_context>

<pallas_src>
import functools

import jax
import jax.numpy as jnp
from jax.experimental import pallas as pl
from jax.experimental.pallas import tpu as pltpu

# ----------------------- synthetic "config" -----------------------
config = dict(
    cooling_rates=3,
    embedding_dim=16,
    forging_temps=3,
    heat_treatments=3,
    locations=4,
    magnifications=5,
    shapes=6,
    soaking_times=3,
)


# ----------------------- in-kernel helpers -----------------------
def _gelu_tanh(x):
    # TODO(synk): PyTorch nn.GELU()/F.gelu default to the exact erf form; erf has
    # no guaranteed Mosaic lowering, so the tanh approximation is used (|err|<~1e-3).
    c = 0.7978845608028654  # sqrt(2/pi)
    return 0.5 * x * (1.0 + jnp.tanh(c * (x + 0.044715 * x * x * x)))


# ----------------------- the fused Pallas kernel -----------------------
def up_fused_kernel(x_ref, t_ref, e_ref, m_ref,
                    w1_ref, w2_ref, w3_ref, w4_ref,
                    gn_ref, lw_ref, lb_ref, ew_ref,
                    o_ref, *, H, W):
    HW = H * W
    Cin = x_ref.shape[1]
    mid = w3_ref.shape[0]
    cc = w4_ref.shape[0]
    Ctot = cc + 7

    # Static lane-roll amounts for the 9 conv taps (dy, dx) in {-1,0,1}^2:
    # patch_k[c, hw] = x[c, hw + dy*W + dx] if in-bounds else 0.
    shifts = [(-(dy * W + dx)) % HW for dy in (-1, 0, 1) for dx in (-1, 0, 1)]

    def im2col(x):
        """(C, HW) -> (9*C, HW) patch matrix via 9 masked lane rotations."""
        taps = []
        for k, sh in enumerate(shifts):
            rolled = x if sh == 0 else pltpu.roll(x, shift=sh, axis=1)
            taps.append(rolled * m_ref[k:k + 1, :])      # zero the out-of-bounds taps
        return jnp.concatenate(taps, axis=0)

    def conv_gn(x, w_ref, gcol, bcol):
        """3x3 conv (pad=1, no bias) as one MXU matmul + GroupNorm(1, Cout)."""
        y = jnp.dot(w_ref[...], im2col(x), preferred_element_type=jnp.float32)
        n = y.shape[0] * y.shape[1]
        s = jnp.sum(y)
        s2 = jnp.sum(y * y)
        mean = s / n
        var = jnp.maximum(s2 / n - mean * mean, 0.0)
        return (y - mean) * jax.lax.rsqrt(var + 1e-5) * gcol + bcol

    x0 = x_ref[0]                                        # (Cin, HW) f32, lane-dense

    # ---------- DoubleConv(in, in, residual=True) ----------
    y1 = _gelu_tanh(conv_gn(x0, w1_ref, gn_ref[0:Cin, 0:1], gn_ref[0:Cin, 1:2]))
    y2 = conv_gn(y1, w2_ref, gn_ref[0:Cin, 2:3], gn_ref[0:Cin, 3:4])
    y2 = _gelu_tanh(x0 + y2)                             # F.gelu(x + double_conv(x))

    # ---------- DoubleConv(in, out_channels-7, mid=in//2) ----------
    y3 = _gelu_tanh(conv_gn(y2, w3_ref, gn_ref[0:mid, 4:5], gn_ref[0:mid, 5:6]))
    y4 = conv_gn(y3, w4_ref, gn_ref[0:cc, 6:7], gn_ref[0:cc, 7:8])   # (cc, HW)

    # ---------- 7 label heads: one block-diagonal matmul ----------
    lab = jnp.dot(e_ref[0], lw_ref[...],
                  preferred_element_type=jnp.float32) + lb_ref[...]  # (7, HW)

    # ---------- time embedding: SiLU -> Linear, as a (Ctot, 1) column ----------
    tcol = t_ref[0]                                      # (emb_dim, 1)
    tcol = tcol * jax.nn.sigmoid(tcol)
    emb = (jnp.dot(ew_ref[...], tcol, preferred_element_type=jnp.float32)
           + gn_ref[0:Ctot, 8:9])                        # (Ctot, 1)

    # ---------- single lane-dense (Ctot, HW) store ----------
    o_ref[0] = jnp.concatenate([y4, lab], axis=0) + emb


# ----------------------- glue helpers -----------------------
def _interp_matrix(n_in, n_out):
    """Row-stochastic matrix implementing 1-D bilinear resize, align_corners=True."""
    if n_in == 1:
        return jnp.ones((n_out, 1), jnp.float32)
    pos = jnp.arange(n_out, dtype=jnp.float32) * (n_in - 1) / (n_out - 1)
    lo = jnp.clip(jnp.floor(pos).astype(jnp.int32), 0, n_in - 2)
    frac = pos - lo.astype(jnp.float32)
    return ((1.0 - frac)[:, None] * jax.nn.one_hot(lo, n_in, dtype=jnp.float32)
            + frac[:, None] * jax.nn.one_hot(lo + 1, n_in, dtype=jnp.float32))


def _conv_masks(H, W):
    """(9, H*W) f32 validity masks for the 9 shifted-roll conv taps."""
    hh = jnp.arange(H)
    ww = jnp.arange(W)
    rows = []
    for dy in (-1, 0, 1):
        for dx in (-1, 0, 1):
            vh = (hh + dy >= 0) & (hh + dy < H)
            vw = (ww + dx >= 0) & (ww + dx < W)
            rows.append((vh[:, None] & vw[None, :]).reshape(-1))
    return jnp.stack(rows, axis=0).astype(jnp.float32)


# ----------------------- full forward -----------------------
def up_forward(params, x, skip_x, t, labels):
    """x: (B,Cx,h,w) NCHW, skip_x: (B,Cs,H,W) NCHW, t: (B,emb_dim), labels: 7 x (B,) ints."""
    B = x.shape[0]
    H, W = skip_x.shape[2], skip_x.shape[3]
    HW = H * W
    emb_dim = t.shape[1]

    # 1) bilinear x2 upsample, align_corners=True (matches nn.Upsample in the module)
    Mh = _interp_matrix(x.shape[2], H)
    Mw = _interp_matrix(x.shape[3], W)
    x_up = jnp.einsum("oi,bcij,pj->bcop", Mh, x, Mw)

    # 2) torch.cat([skip_x, x], dim=1); keep channel-major, flatten spatial (free)
    x_cat = jnp.concatenate([skip_x, x_up], axis=1).astype(jnp.float32)
    Cin = x_cat.shape[1]
    x_flat = x_cat.reshape(B, Cin, HW)

    # conv weights (Cout, Cin, 3, 3) -> (Cout, 9*Cin), tap-major, f32
    def prep_w(w):
        cout, cin = w.shape[0], w.shape[1]
        return jnp.transpose(w, (0, 2, 3, 1)).reshape(cout, 9 * cin).astype(jnp.float32)

    w1, w2, w3, w4 = (prep_w(params[k]) for k in ("w1", "w2", "w3", "w4"))
    mid, cc = w3.shape[0], w4.shape[0]
    Ctot = cc + 7

    # pack GroupNorm affines + emb_layer bias into one small slab: columns
    # [g1,b1,g2,b2,g3,b3,g4,b4,emb_b], rows = channel index (zero padded)
    PMAX = max(Cin, mid, cc, Ctot)
    pad1 = lambda v: jnp.pad(v.astype(jnp.float32), (0, PMAX - v.shape[0]))
    gn = jnp.stack([pad1(params["g1"]), pad1(params["b1"]),
                    pad1(params["g2"]), pad1(params["b2"]),
                    pad1(params["g3"]), pad1(params["b3"]),
                    pad1(params["g4"]), pad1(params["b4"]),
                    pad1(params["emb_b"])], axis=1)                    # (PMAX, 9)

    # 7 label-head embedding gathers (glue), packed block-diagonally so the
    # kernel does a single (7, 7E) @ (7E, HW) matmul.
    e_stack = jnp.stack([params["label_tables"][l][labels[l]] for l in range(7)],
                        axis=1).astype(jnp.float32)                    # (B, 7, E)
    E = e_stack.shape[-1]
    eye7 = jnp.eye(7, dtype=jnp.float32)
    e_blk = (e_stack[:, :, None, :] * eye7[None, :, :, None]).reshape(B, 7, 7 * E)

    lw = params["label_w"].reshape(7 * E, HW).astype(jnp.float32)      # (7E, HW)
    lb = params["label_b"].reshape(7, HW).astype(jnp.float32)          # (7, HW)
    ew = jnp.transpose(params["emb_w"]).astype(jnp.float32)            # (Ctot, emb_dim)
    t3 = t.reshape(B, emb_dim, 1).astype(jnp.float32)
    masks = _conv_masks(H, W)                                          # (9, HW)

    full2 = lambda s: pl.BlockSpec(s, lambda b: (0, 0))

    out = pl.pallas_call(
        functools.partial(up_fused_kernel, H=H, W=W),
        out_shape=jax.ShapeDtypeStruct((B, Ctot, HW), jnp.float32),
        grid=(B,),
        in_specs=[
            pl.BlockSpec((1, Cin, HW), lambda b: (b, 0, 0)),    # x, (C, HW) lane-dense
            pl.BlockSpec((1, emb_dim, 1), lambda b: (b, 0, 0)),  # t (column)
            pl.BlockSpec((1, 7, 7 * E), lambda b: (b, 0, 0)),    # block-diag label embs
            full2((9, HW)),                                      # conv tap masks
            full2((Cin, 9 * Cin)),                               # conv1 weights
            full2((Cin, 9 * Cin)),                               # conv2 weights
            full2((mid, 9 * Cin)),                               # conv3 weights
            full2((cc, 9 * mid)),                                # conv4 weights
            full2((PMAX, 9)),                                    # packed GN affines + emb bias
            full2((7 * E, HW)),                                  # label-head weights
            full2((7, HW)),                                      # label-head biases
            full2((Ctot, emb_dim)),                              # emb_layer weight (out, in)
        ],
        out_specs=pl.BlockSpec((1, Ctot, HW), lambda b: (b, 0, 0)),   # lane-dense (C, HW)
        compiler_params=pltpu.CompilerParams(
            dimension_semantics=("parallel",),   # batch-parallel: both TCs on v7x
        ),
    )(x_flat, t3, e_blk, masks, w1, w2, w3, w4, gn, lw, lb, ew)

    # (B, C, HW) -> (B, C, H, W): free reshape, already NCHW channel order
    return out.reshape(B, Ctot, H, W)


# ----------------------- deterministic parameter init -----------------------
def init_params(key, in_channels, out_channels, imsize, emb_dim, cfg):
    E = cfg["embedding_dim"]
    mid = in_channels // 2
    cconv = out_channels - 7
    HW = imsize * imsize
    keys = list(jax.random.split(key, 64))
    kit = iter(keys)

    def nrm(shape, scale=0.05):
        return scale * jax.random.normal(next(kit), shape, jnp.float32)

    params = dict(
        w1=nrm((in_channels, in_channels, 3, 3)),
        g1=jnp.ones((in_channels,), jnp.float32), b1=jnp.zeros((in_channels,), jnp.float32),
        w2=nrm((in_channels, in_channels, 3, 3)),
        g2=jnp.ones((in_channels,), jnp.float32), b2=jnp.zeros((in_channels,), jnp.float32),
        w3=nrm((mid, in_channels, 3, 3)),
        g3=jnp.ones((mid,), jnp.float32), b3=jnp.zeros((mid,), jnp.float32),
        w4=nrm((cconv, mid, 3, 3)),
        g4=jnp.ones((cconv,), jnp.float32), b4=jnp.zeros((cconv,), jnp.float32),
        emb_w=nrm((emb_dim, out_channels)),   # (in, out) layout
        emb_b=nrm((out_channels,)),
    )
    vocabs = [cfg["shapes"], cfg["locations"], cfg["cooling_rates"], cfg["soaking_times"],
              cfg["heat_treatments"], cfg["forging_temps"], cfg["magnifications"]]
    params["label_tables"] = [nrm((v, E), 1.0) for v in vocabs]
    params["label_w"] = jnp.stack([nrm((E, HW)) for _ in range(7)], axis=0)   # (7, E, HW)
    params["label_b"] = jnp.stack([nrm((HW,)) for _ in range(7)], axis=0)     # (7, HW)
    return params


# ----------------------- main -----------------------
if __name__ == "__main__":
    cfg = config
    B = 2
    in_channels = 8        # skip (4) + upsampled (4) channels
    out_channels = 16      # conv produces out_channels-7 = 9, +7 label maps = 16
    imsize = 16
    emb_dim = 32

    key = jax.random.PRNGKey(0)
    kp, kx, ks, kt, kl = jax.random.split(key, 5)
    params = init_params(kp, in_channels, out_channels, imsize, emb_dim, cfg)

    x = jax.random.normal(kx, (B, in_channels // 2, imsize // 2, imsize // 2), jnp.float32)
    skip_x = jax.random.normal(ks, (B, in_channels // 2, imsize, imsize), jnp.float32)
    t = jax.random.normal(kt, (B, emb_dim), jnp.float32)

    vocabs = [cfg["shapes"], cfg["locations"], cfg["cooling_rates"], cfg["soaking_times"],
              cfg["heat_treatments"], cfg["forging_temps"], cfg["magnifications"]]
    lkeys = jax.random.split(kl, 7)
    labels = [jax.random.randint(lkeys[i], (B,), 0, vocabs[i]) for i in range(7)]

    out = up_forward(params, x, skip_x, t, labels)
    out = jax.block_until_ready(out)
    assert out.shape == (B, out_channels, imsize, imsize), out.shape
    assert bool(jnp.all(jnp.isfinite(out)))
    print("KERNEL_OK")
</pallas_src>

<mosaic_0001>
module attributes {stable_mosaic.version = 11 : i64} {
  func.func @up_fused_kernel(%arg0: i32, %arg1: memref<1x8x256xf32, #tpu.memory_space<vmem>>, %arg2: memref<1x32x1xf32, #tpu.memory_space<vmem>>, %arg3: memref<1x7x112xf32, #tpu.memory_space<vmem>>, %arg4: memref<9x256xf32, #tpu.memory_space<vmem>>, %arg5: memref<8x72xf32, #tpu.memory_space<vmem>>, %arg6: memref<8x72xf32, #tpu.memory_space<vmem>>, %arg7: memref<4x72xf32, #tpu.memory_space<vmem>>, %arg8: memref<9x36xf32, #tpu.memory_space<vmem>>, %arg9: memref<16x9xf32, #tpu.memory_space<vmem>>, %arg10: memref<112x256xf32, #tpu.memory_space<vmem>>, %arg11: memref<7x256xf32, #tpu.memory_space<vmem>>, %arg12: memref<16x32xf32, #tpu.memory_space<vmem>>, %arg13: memref<1x16x256xf32, #tpu.memory_space<vmem>>) attributes {dimension_semantics = [#tpu.dimension_semantics<parallel>], iteration_bounds = array<i64: 2>, scalar_prefetch = 0 : i64, scratch_operands = 0 : i64, tpu.core_type = #tpu.core_type<tc>, window_params = [{transform_indices = @transform_0, window_bounds = array<i64: 1, 8, 256>}, {transform_indices = @transform_1, window_bounds = array<i64: 1, 32, 1>}, {transform_indices = @transform_2, window_bounds = array<i64: 1, 7, 112>}, {pipeline_mode = #tpu.pipeline_mode<synchronous>, transform_indices = @transform_3, window_bounds = array<i64: 9, 256>}, {pipeline_mode = #tpu.pipeline_mode<synchronous>, transform_indices = @transform_4, window_bounds = array<i64: 8, 72>}, {pipeline_mode = #tpu.pipeline_mode<synchronous>, transform_indices = @transform_5, window_bounds = array<i64: 8, 72>}, {pipeline_mode = #tpu.pipeline_mode<synchronous>, transform_indices = @transform_6, window_bounds = array<i64: 4, 72>}, {pipeline_mode = #tpu.pipeline_mode<synchronous>, transform_indices = @transform_7, window_bounds = array<i64: 9, 36>}, {pipeline_mode = #tpu.pipeline_mode<synchronous>, transform_indices = @transform_8, window_bounds = array<i64: 16, 9>}, {pipeline_mode = #tpu.pipeline_mode<synchronous>, transform_indices = @transform_9, window_bounds = array<i64: 112, 256>}, {pipeline_mode = #tpu.pipeline_mode<synchronous>, transform_indices = @transform_10, window_bounds = array<i64: 7, 256>}, {pipeline_mode = #tpu.pipeline_mode<synchronous>, transform_indices = @transform_11, window_bounds = array<i64: 16, 32>}, {transform_indices = @transform_12, window_bounds = array<i64: 1, 16, 256>}]} {
    %c0 = arith.constant 0 : index
    %c0_0 = arith.constant 0 : index
    %c0_1 = arith.constant 0 : index
    %0 = vector.load %arg1[%c0, %c0_0, %c0_1] : memref<1x8x256xf32, #tpu.memory_space<vmem>>, vector<1x8x256xf32>
    %1 = vector.shape_cast %0 : vector<1x8x256xf32> to vector<8x256xf32>
    %c0_2 = arith.constant 0 : index
    %c0_3 = arith.constant 0 : index
    %2 = vector.load %arg9[%c0_2, %c0_3] : memref<16x9xf32, #tpu.memory_space<vmem>>, vector<8x1xf32>
    %c0_4 = arith.constant 0 : index
    %c1 = arith.constant 1 : index
    %3 = vector.load %arg9[%c0_4, %c1] : memref<16x9xf32, #tpu.memory_space<vmem>>, vector<8x1xf32>
    %c0_5 = arith.constant 0 : index
    %c0_6 = arith.constant 0 : index
    %4 = vector.load %arg5[%c0_5, %c0_6] : memref<8x72xf32, #tpu.memory_space<vmem>>, vector<8x72xf32>
    %c17_i32 = arith.constant 17 : i32
    %5 = tpu.dynamic_rotate %1 by %c17_i32 dim 1 : vector<8x256xf32>, i32 -> vector<8x256xf32>
    %c0_7 = arith.constant 0 : index
    %c0_8 = arith.constant 0 : index
    %6 = vector.load %arg4[%c0_7, %c0_8] : memref<9x256xf32, #tpu.memory_space<vmem>>, vector<1x256xf32>
    %7 = vector.broadcast %6 : vector<1x256xf32> to vector<8x256xf32>
    %8 = arith.mulf %5, %7 : vector<8x256xf32>
    %c16_i32 = arith.constant 16 : i32
    %9 = tpu.dynamic_rotate %1 by %c16_i32 dim 1 : vector<8x256xf32>, i32 -> vector<8x256xf32>
    %c1_9 = arith.constant 1 : index
    %c0_10 = arith.constant 0 : index
    %10 = vector.load %arg4[%c1_9, %c0_10] : memref<9x256xf32, #tpu.memory_space<vmem>>, vector<1x256xf32>
    %11 = vector.broadcast %10 : vector<1x256xf32> to vector<8x256xf32>
    %12 = arith.mulf %9, %11 : vector<8x256xf32>
    %c15_i32 = arith.constant 15 : i32
    %13 = tpu.dynamic_rotate %1 by %c15_i32 dim 1 : vector<8x256xf32>, i32 -> vector<8x256xf32>
    %c2 = arith.constant 2 : index
    %c0_11 = arith.constant 0 : index
    %14 = vector.load %arg4[%c2, %c0_11] : memref<9x256xf32, #tpu.memory_space<vmem>>, vector<1x256xf32>
    %15 = vector.broadcast %14 : vector<1x256xf32> to vector<8x256xf32>
    %16 = arith.mulf %13, %15 : vector<8x256xf32>
    %c1_i32 = arith.constant 1 : i32
    %17 = tpu.dynamic_rotate %1 by %c1_i32 dim 1 : vector<8x256xf32>, i32 -> vector<8x256xf32>
    %c3 = arith.constant 3 : index
    %c0_12 = arith.constant 0 : index
    %18 = vector.load %arg4[%c3, %c0_12] : memref<9x256xf32, #tpu.memory_space<vmem>>, vector<1x256xf32>
    %19 = vector.broadcast %18 : vector<1x256xf32> to vector<8x256xf32>
    %20 = arith.mulf %17, %19 : vector<8x256xf32>
    %c4 = arith.constant 4 : index
    %c0_13 = arith.constant 0 : index
    %21 = vector.load %arg4[%c4, %c0_13] : memref<9x256xf32, #tpu.memory_space<vmem>>, vector<1x256xf32>
    %22 = vector.broadcast %21 : vector<1x256xf32> to vector<8x256xf32>
    %23 = arith.mulf %1, %22 : vector<8x256xf32>
    %c255_i32 = arith.constant 255 : i32
    %24 = tpu.dynamic_rotate %1 by %c255_i32 dim 1 : vector<8x256xf32>, i32 -> vector<8x256xf32>
    %c5 = arith.constant 5 : index
    %c0_14 = arith.constant 0 : index
    %25 = vector.load %arg4[%c5, %c0_14] : memref<9x256xf32, #tpu.memory_space<vmem>>, vector<1x256xf32>
    %26 = vector.broadcast %25 : vector<1x256xf32> to vector<8x256xf32>
    %27 = arith.mulf %24, %26 : vector<8x256xf32>
    %c241_i32 = arith.constant 241 : i32
    %28 = tpu.dynamic_rotate %1 by %c241_i32 dim 1 : vector<8x256xf32>, i32 -> vector<8x256xf32>
    %c6 = arith.constant 6 : index
    %c0_15 = arith.constant 0 : index
    %29 = vector.load %arg4[%c6, %c0_15] : memref<9x256xf32, #tpu.memory_space<vmem>>, vector<1x256xf32>
    %30 = vector.broadcast %29 : vector<1x256xf32> to vector<8x256xf32>
    %31 = arith.mulf %28, %30 : vector<8x256xf32>
    %c240_i32 = arith.constant 240 : i32
    %32 = tpu.dynamic_rotate %1 by %c240_i32 dim 1 : vector<8x256xf32>, i32 -> vector<8x256xf32>
    %c7 = arith.constant 7 : index
    %c0_16 = arith.constant 0 : index
    %33 = vector.load %arg4[%c7, %c0_16] : memref<9x256xf32, #tpu.memory_space<vmem>>, vector<1x256xf32>
    %34 = vector.broadcast %33 : vector<1x256xf32> to vector<8x256xf32>
    %35 = arith.mulf %32, %34 : vector<8x256xf32>
    %c239_i32 = arith.constant 239 : i32
    %36 = tpu.dynamic_rotate %1 by %c239_i32 dim 1 : vector<8x256xf32>, i32 -> vector<8x256xf32>
    %c8 = arith.constant 8 : index
    %c0_17 = arith.constant 0 : index
    %37 = vector.load %arg4[%c8, %c0_17] : memref<9x256xf32, #tpu.memory_space<vmem>>, vector<1x256xf32>
    %38 = vector.broadcast %37 : vector<1x256xf32> to vector<8x256xf32>
    %39 = arith.mulf %36, %38 : vector<8x256xf32>
    %40 = tpu.concatenate %8, %12, %16, %20, %23, %27, %31, %35, %39 in 0 : vector<8x256xf32>, vector<8x256xf32>, vector<8x256xf32>, vector<8x256xf32>, vector<8x256xf32>, vector<8x256xf32>, vector<8x256xf32>, vector<8x256xf32>, vector<8x256xf32> -> vector<72x256xf32>
    %cst = arith.constant dense<0.000000e+00> : vector<8x256xf32>
    %41 = tpu.matmul %4, %40, %cst {dimension_numbers = #tpu.dot_dimension_numbers<[1], [0], [0], [1], [0, 0, 1, 1], [], []>} : vector<8x72xf32>, vector<72x256xf32>, vector<8x256xf32> -> vector<8x256xf32>
    %42 = vector.shape_cast %41 : vector<8x256xf32> to vector<1x8x256xf32>
    %cst_18 = arith.constant dense<0.000000e+00> : vector<1xf32>
    %43 = vector.multi_reduction <add>, %42, %cst_18 [1, 2] : vector<1x8x256xf32> to vector<1xf32>
    %44 = vector.shape_cast %43 : vector<1xf32> to vector<1x1x1xf32>
    %45 = vector.extract %44[0, 0, 0] : f32 from vector<1x1x1xf32>
    %46 = arith.mulf %41, %41 : vector<8x256xf32>
    %47 = vector.shape_cast %46 : vector<8x256xf32> to vector<1x8x256xf32>
    %cst_19 = arith.constant dense<0.000000e+00> : vector<1xf32>
    %48 = vector.multi_reduction <add>, %47, %cst_19 [1, 2] : vector<1x8x256xf32> to vector<1xf32>
    %49 = vector.shape_cast %48 : vector<1xf32> to vector<1x1x1xf32>
    %50 = vector.extract %49[0, 0, 0] : f32 from vector<1x1x1xf32>
    %cst_20 = arith.constant 2.048000e+03 : f32
    %51 = arith.divf %45, %cst_20 : f32
    %cst_21 = arith.constant 2.048000e+03 : f32
    %52 = arith.divf %50, %cst_21 : f32
    %53 = arith.mulf %51, %51 : f32
    %54 = arith.subf %52, %53 : f32
    %cst_22 = arith.constant 0.000000e+00 : f32
    %55 = arith.maximumf %54, %cst_22 : f32
    %56 = vector.broadcast %51 : f32 to vector<8x256xf32>
    %57 = arith.subf %41, %56 : vector<8x256xf32>
    %cst_23 = arith.constant 9.99999974E-6 : f32
    %58 = arith.addf %55, %cst_23 : f32
    %59 = math.rsqrt %58 : f32
    %60 = vector.broadcast %59 : f32 to vector<8x256xf32>
    %61 = arith.mulf %57, %60 : vector<8x256xf32>
    %62 = vector.broadcast %2 : vector<8x1xf32> to vector<8x256xf32>
    %63 = arith.mulf %61, %62 : vector<8x256xf32>
    %64 = vector.broadcast %3 : vector<8x1xf32> to vector<8x256xf32>
    %65 = arith.addf %63, %64 : vector<8x256xf32>
    %cst_24 = arith.constant 5.000000e-01 : f32
    %66 = vector.broadcast %cst_24 : f32 to vector<8x256xf32>
    %67 = arith.mulf %66, %65 : vector<8x256xf32>
    %cst_25 = arith.constant 4.471500e-02 : f32
    %68 = vector.broadcast %cst_25 : f32 to vector<8x256xf32>
    %69 = arith.mulf %68, %65 : vector<8x256xf32>
    %70 = arith.mulf %69, %65 : vector<8x256xf32>
    %71 = arith.mulf %70, %65 : vector<8x256xf32>
    %72 = arith.addf %65, %71 : vector<8x256xf32>
    %cst_26 = arith.constant 0.797884583 : f32
    %73 = vector.broadcast %cst_26 : f32 to vector<8x256xf32>
    %74 = arith.mulf %73, %72 : vector<8x256xf32>
    %75 = math.tanh %74 : vector<8x256xf32>
    %cst_27 = arith.constant 1.000000e+00 : f32
    %76 = vector.broadcast %cst_27 : f32 to vector<8x256xf32>
    %77 = arith.addf %76, %75 : vector<8x256xf32>
    %78 = arith.mulf %67, %77 : vector<8x256xf32>
    %c0_28 = arith.constant 0 : index
    %c2_29 = arith.constant 2 : index
    %79 = vector.load %arg9[%c0_28, %c2_29] : memref<16x9xf32, #tpu.memory_space<vmem>>, vector<8x1xf32>
    %c0_30 = arith.constant 0 : index
    %c3_31 = arith.constant 3 : index
    %80 = vector.load %arg9[%c0_30, %c3_31] : memref<16x9xf32, #tpu.memory_space<vmem>>, vector<8x1xf32>
    %c0_32 = arith.constant 0 : index
    %c0_33 = arith.constant 0 : index
    %81 = vector.load %arg6[%c0_32, %c0_33] : memref<8x72xf32, #tpu.memory_space<vmem>>, vector<8x72xf32>
    %c17_i32_34 = arith.constant 17 : i32
    %82 = tpu.dynamic_rotate %78 by %c17_i32_34 dim 1 : vector<8x256xf32>, i32 -> vector<8x256xf32>
    %c0_35 = arith.constant 0 : index
    %c0_36 = arith.constant 0 : index
    %83 = vector.load %arg4[%c0_35, %c0_36] : memref<9x256xf32, #tpu.memory_space<vmem>>, vector<1x256xf32>
    %84 = vector.broadcast %83 : vector<1x256xf32> to vector<8x256xf32>
    %85 = arith.mulf %82, %84 : vector<8x256xf32>
    %c16_i32_37 = arith.constant 16 : i32
    %86 = tpu.dynamic_rotate %78 by %c16_i32_37 dim 1 : vector<8x256xf32>, i32 -> vector<8x256xf32>
    %c1_38 = arith.constant 1 : index
    %c0_39 = arith.constant 0 : index
    %87 = vector.load %arg4[%c1_38, %c0_39] : memref<9x256xf32, #tpu.memory_space<vmem>>, vector<1x256xf32>
    %88 = vector.broadcast %87 : vector<1x256xf32> to vector<8x256xf32>
    %89 = arith.mulf %86, %88 : vector<8x256xf32>
    %c15_i32_40 = arith.constant 15 : i32
    %90 = tpu.dynamic_rotate %78 by %c15_i32_40 dim 1 : vector<8x256xf32>, i32 -> vector<8x256xf32>
    %c2_41 = arith.constant 2 : index
    %c0_42 = arith.constant 0 : index
    %91 = vector.load %arg4[%c2_41, %c0_42] : memref<9x256xf32, #tpu.memory_space<vmem>>, vector<1x256xf32>
    %92 = vector.broadcast %91 : vector<1x256xf32> to vector<8x256xf32>
    %93 = arith.mulf %90, %92 : vector<8x256xf32>
    %c1_i32_43 = arith.constant 1 : i32
    %94 = tpu.dynamic_rotate %78 by %c1_i32_43 dim 1 : vector<8x256xf32>, i32 -> vector<8x256xf32>
    %c3_44 = arith.constant 3 : index
    %c0_45 = arith.constant 0 : index
    %95 = vector.load %arg4[%c3_44, %c0_45] : memref<9x256xf32, #tpu.memory_space<vmem>>, vector<1x256xf32>
    %96 = vector.broadcast %95 : vector<1x256xf32> to vector<8x256xf32>
    %97 = arith.mulf %94, %96 : vector<8x256xf32>
    %c4_46 = arith.constant 4 : index
    %c0_47 = arith.constant 0 : index
    %98 = vector.load %arg4[%c4_46, %c0_47] : memref<9x256xf32, #tpu.memory_space<vmem>>, vector<1x256xf32>
    %99 = vector.broadcast %98 : vector<1x256xf32> to vector<8x256xf32>
    %100 = arith.mulf %78, %99 : vector<8x256xf32>
    %c255_i32_48 = arith.constant 255 : i32
    %101 = tpu.dynamic_rotate %78 by %c255_i32_48 dim 1 : vector<8x256xf32>, i32 -> vector<8x256xf32>
    %c5_49 = arith.constant 5 : index
    %c0_50 = arith.constant 0 : index
    %102 = vector.load %arg4[%c5_49, %c0_50] : memref<9x256xf32, #tpu.memory_space<vmem>>, vector<1x256xf32>
    %103 = vector.broadcast %102 : vector<1x256xf32> to vector<8x256xf32>
    %104 = arith.mulf %101, %103 : vector<8x256xf32>
    %c241_i32_51 = arith.constant 241 : i32
    %105 = tpu.dynamic_rotate %78 by %c241_i32_51 dim 1 : vector<8x256xf32>, i32 -> vector<8x256xf32>
    %c6_52 = arith.constant 6 : index
    %c0_53 = arith.constant 0 : index
    %106 = vector.load %arg4[%c6_52, %c0_53] : memref<9x256xf32, #tpu.memory_space<vmem>>, vector<1x256xf32>
    %107 = vector.broadcast %106 : vector<1x256xf32> to vector<8x256xf32>
    %108 = arith.mulf %105, %107 : vector<8x256xf32>
    %c240_i32_54 = arith.constant 240 : i32
    %109 = tpu.dynamic_rotate %78 by %c240_i32_54 dim 1 : vector<8x256xf32>, i32 -> vector<8x256xf32>
    %c7_55 = arith.constant 7 : index
    %c0_56 = arith.constant 0 : index
    %110 = vector.load %arg4[%c7_55, %c0_56] : memref<9x256xf32, #tpu.memory_space<vmem>>, vector<1x256xf32>
    %111 = vector.broadcast %110 : vector<1x256xf32> to vector<8x256xf32>
    %112 = arith.mulf %109, %111 : vector<8x256xf32>
    %c239_i32_57 = arith.constant 239 : i32
    %113 = tpu.dynamic_rotate %78 by %c239_i32_57 dim 1 : vector<8x256xf32>, i32 -> vector<8x256xf32>
    %c8_58 = arith.constant 8 : index
    %c0_59 = arith.constant 0 : index
    %114 = vector.load %arg4[%c8_58, %c0_59] : memref<9x256xf32, #tpu.memory_space<vmem>>, vector<1x256xf32>
    %115 = vector.broadcast %114 : vector<1x256xf32> to vector<8x256xf32>
    %116 = arith.mulf %113, %115 : vector<8x256xf32>
    %117 = tpu.concatenate %85, %89, %93, %97, %100, %104, %108, %112, %116 in 0 : vector<8x256xf32>, vector<8x256xf32>, vector<8x256xf32>, vector<8x256xf32>, vector<8x256xf32>, vector<8x256xf32>, vector<8x256xf32>, vector<8x256xf32>, vector<8x256xf32> -> vector<72x256xf32>
    %cst_60 = arith.constant dense<0.000000e+00> : vector<8x256xf32>
    %118 = tpu.matmul %81, %117, %cst_60 {dimension_numbers = #tpu.dot_dimension_numbers<[1], [0], [0], [1], [0, 0, 1, 1], [], []>} : vector<8x72xf32>, vector<72x256xf32>, vector<8x256xf32> -> vector<8x256xf32>
    %119 = vector.shape_cast %118 : vector<8x256xf32> to vector<1x8x256xf32>
    %cst_61 = arith.constant dense<0.000000e+00> : vector<1xf32>
    %120 = vector.multi_reduction <add>, %119, %cst_61 [1, 2] : vector<1x8x256xf32> to vector<1xf32>
    %121 = vector.shape_cast %120 : vector<1xf32> to vector<1x1x1xf32>
    %122 = vector.extract %121[0, 0, 0] : f32 from vector<1x1x1xf32>
    %123 = arith.mulf %118, %118 : vector<8x256xf32>
    %124 = vector.shape_cast %123 : vector<8x256xf32> to vector<1x8x256xf32>
    %cst_62 = arith.constant dense<0.000000e+00> : vector<1xf32>
    %125 = vector.multi_reduction <add>, %124, %cst_62 [1, 2] : vector<1x8x256xf32> to vector<1xf32>
    %126 = vector.shape_cast %125 : vector<1xf32> to vector<1x1x1xf32>
    %127 = vector.extract %126[0, 0, 0] : f32 from vector<1x1x1xf32>
    %cst_63 = arith.constant 2.048000e+03 : f32
    %128 = arith.divf %122, %cst_63 : f32
    %cst_64 = arith.constant 2.048000e+03 : f32
    %129 = arith.divf %127, %cst_64 : f32
    %130 = arith.mulf %128, %128 : f32
    %131 = arith.subf %129, %130 : f32
    %cst_65 = arith.constant 0.000000e+00 : f32
    %132 = arith.maximumf %131, %cst_65 : f32
    %133 = vector.broadcast %128 : f32 to vector<8x256xf32>
    %134 = arith.subf %118, %133 : vector<8x256xf32>
    %cst_66 = arith.constant 9.99999974E-6 : f32
    %135 = arith.addf %132, %cst_66 : f32
    %136 = math.rsqrt %135 : f32
    %137 = vector.broadcast %136 : f32 to vector<8x256xf32>
    %138 = arith.mulf %134, %137 : vector<8x256xf32>
    %139 = vector.broadcast %79 : vector<8x1xf32> to vector<8x256xf32>
    %140 = arith.mulf %138, %139 : vector<8x256xf32>
    %141 = vector.broadcast %80 : vector<8x1xf32> to vector<8x256xf32>
    %142 = arith.addf %140, %141 : vector<8x256xf32>
    %143 = arith.addf %1, %142 : vector<8x256xf32>
    %cst_67 = arith.constant 5.000000e-01 : f32
    %144 = vector.broadcast %cst_67 : f32 to vector<8x256xf32>
    %145 = arith.mulf %144, %143 : vector<8x256xf32>
    %cst_68 = arith.constant 4.471500e-02 : f32
    %146 = vector.broadcast %cst_68 : f32 to vector<8x256xf32>
    %147 = arith.mulf %146, %143 : vector<8x256xf32>
    %148 = arith.mulf %147, %143 : vector<8x256xf32>
    %149 = arith.mulf %148, %143 : vector<8x256xf32>
    %150 = arith.addf %143, %149 : vector<8x256xf32>
    %cst_69 = arith.constant 0.797884583 : f32
    %151 = vector.broadcast %cst_69 : f32 to vector<8x256xf32>
    %152 = arith.mulf %151, %150 : vector<8x256xf32>
    %153 = math.tanh %152 : vector<8x256xf32>
    %cst_70 = arith.constant 1.000000e+00 : f32
    %154 = vector.broadcast %cst_70 : f32 to vector<8x256xf32>
    %155 = arith.addf %154, %153 : vector<8x256xf32>
    %156 = arith.mulf %145, %155 : vector<8x256xf32>
    %c0_71 = arith.constant 0 : index
    %c4_72 = arith.constant 4 : index
    %157 = vector.load %arg9[%c0_71, %c4_72] : memref<16x9xf32, #tpu.memory_space<vmem>>, vector<4x1xf32>
    %c0_73 = arith.constant 0 : index
    %c5_74 = arith.constant 5 : index
    %158 = vector.load %arg9[%c0_73, %c5_74] : memref<16x9xf32, #tpu.memory_space<vmem>>, vector<4x1xf32>
    %c0_75 = arith.constant 0 : index
    %c0_76 = arith.constant 0 : index
    %159 = vector.load %arg7[%c0_75, %c0_76] : memref<4x72xf32, #tpu.memory_space<vmem>>, vector<4x72xf32>
    %c17_i32_77 = arith.constant 17 : i32
    %160 = tpu.dynamic_rotate %156 by %c17_i32_77 dim 1 : vector<8x256xf32>, i32 -> vector<8x256xf32>
    %c0_78 = arith.constant 0 : index
    %c0_79 = arith.constant 0 : index
    %161 = vector.load %arg4[%c0_78, %c0_79] : memref<9x256xf32, #tpu.memory_space<vmem>>, vector<1x256xf32>
    %162 = vector.broadcast %161 : vector<1x256xf32> to vector<8x256xf32>
    %163 = arith.mulf %160, %162 : vector<8x256xf32>
    %c16_i32_80 = arith.constant 16 : i32
    %164 = tpu.dynamic_rotate %156 by %c16_i32_80 dim 1 : vector<8x256xf32>, i32 -> vector<8x256xf32>
    %c1_81 = arith.constant 1 : index
    %c0_82 = arith.constant 0 : index
    %165 = vector.load %arg4[%c1_81, %c0_82] : memref<9x256xf32, #tpu.memory_space<vmem>>, vector<1x256xf32>
    %166 = vector.broadcast %165 : vector<1x256xf32> to vector<8x256xf32>
    %167 = arith.mulf %164, %166 : vector<8x256xf32>
    %c15_i32_83 = arith.constant 15 : i32
    %168 = tpu.dynamic_rotate %156 by %c15_i32_83 dim 1 : vector<8x256xf32>, i32 -> vector<8x256xf32>
    %c2_84 = arith.constant 2 : index
    %c0_85 = arith.constant 0 : index
    %169 = vector.load %arg4[%c2_84, %c0_85] : memref<9x256xf32, #tpu.memory_space<vmem>>, vector<1x256xf32>
    %170 = vector.broadcast %169 : vector<1x256xf32> to vector<8x256xf32>
    %171 = arith.mulf %168, %170 : vector<8x256xf32>
    %c1_i32_86 = arith.constant 1 : i32
    %172 = tpu.dynamic_rotate %156 by %c1_i32_86 dim 1 : vector<8x256xf32>, i32 -> vector<8x256xf32>
    %c3_87 = arith.constant 3 : index
    %c0_88 = arith.constant 0 : index
    %173 = vector.load %arg4[%c3_87, %c0_88] : memref<9x256xf32, #tpu.memory_space<vmem>>, vector<1x256xf32>
    %174 = vector.broadcast %173 : vector<1x256xf32> to vector<8x256xf32>
    %175 = arith.mulf %172, %174 : vector<8x256xf32>
    %c4_89 = arith.constant 4 : index
    %c0_90 = arith.constant 0 : index
    %176 = vector.load %arg4[%c4_89, %c0_90] : memref<9x256xf32, #tpu.memory_space<vmem>>, vector<1x256xf32>
    %177 = vector.broadcast %176 : vector<1x256xf32> to vector<8x256xf32>
    %178 = arith.mulf %156, %177 : vector<8x256xf32>
    %c255_i32_91 = arith.constant 255 : i32
    %179 = tpu.dynamic_rotate %156 by %c255_i32_91 dim 1 : vector<8x256xf32>, i32 -> vector<8x256xf32>
    %c5_92 = arith.constant 5 : index
    %c0_93 = arith.constant 0 : index
    %180 = vector.load %arg4[%c5_92, %c0_93] : memref<9x256xf32, #tpu.memory_space<vmem>>, vector<1x256xf32>
    %181 = vector.broadcast %180 : vector<1x256xf32> to vector<8x256xf32>
    %182 = arith.mulf %179, %181 : vector<8x256xf32>
    %c241_i32_94 = arith.constant 241 : i32
    %183 = tpu.dynamic_rotate %156 by %c241_i32_94 dim 1 : vector<8x256xf32>, i32 -> vector<8x256xf32>
    %c6_95 = arith.constant 6 : index
    %c0_96 = arith.constant 0 : index
    %184 = vector.load %arg4[%c6_95, %c0_96] : memref<9x256xf32, #tpu.memory_space<vmem>>, vector<1x256xf32>
    %185 = vector.broadcast %184 : vector<1x256xf32> to vector<8x256xf32>
    %186 = arith.mulf %183, %185 : vector<8x256xf32>
    %c240_i32_97 = arith.constant 240 : i32
    %187 = tpu.dynamic_rotate %156 by %c240_i32_97 dim 1 : vector<8x256xf32>, i32 -> vector<8x256xf32>
    %c7_98 = arith.constant 7 : index
    %c0_99 = arith.constant 0 : index
    %188 = vector.load %arg4[%c7_98, %c0_99] : memref<9x256xf32, #tpu.memory_space<vmem>>, vector<1x256xf32>
    %189 = vector.broadcast %188 : vector<1x256xf32> to vector<8x256xf32>
    %190 = arith.mulf %187, %189 : vector<8x256xf32>
    %c239_i32_100 = arith.constant 239 : i32
    %191 = tpu.dynamic_rotate %156 by %c239_i32_100 dim 1 : vector<8x256xf32>, i32 -> vector<8x256xf32>
    %c8_101 = arith.constant 8 : index
    %c0_102 = arith.constant 0 : index
    %192 = vector.load %arg4[%c8_101, %c0_102] : memref<9x256xf32, #tpu.memory_space<vmem>>, vector<1x256xf32>
    %193 = vector.broadcast %192 : vector<1x256xf32> to vector<8x256xf32>
    %194 = arith.mulf %191, %193 : vector<8x256xf32>
    %195 = tpu.concatenate %163, %167, %171, %175, %178, %182, %186, %190, %194 in 0 : vector<8x256xf32>, vector<8x256xf32>, vector<8x256xf32>, vector<8x256xf32>, vector<8x256xf32>, vector<8x256xf32>, vector<8x256xf32>, vector<8x256xf32>, vector<8x256xf32> -> vector<72x256xf32>
    %cst_103 = arith.constant dense<0.000000e+00> : vector<4x256xf32>
    %196 = tpu.matmul %159, %195, %cst_103 {dimension_numbers = #tpu.dot_dimension_numbers<[1], [0], [0], [1], [0, 0, 1, 1], [], []>} : vector<4x72xf32>, vector<72x256xf32>, vector<4x256xf32> -> vector<4x256xf32>
    %197 = vector.shape_cast %196 : vector<4x256xf32> to vector<1x4x256xf32>
    %cst_104 = arith.constant dense<0.000000e+00> : vector<1xf32>
    %198 = vector.multi_reduction <add>, %197, %cst_104 [1, 2] : vector<1x4x256xf32> to vector<1xf32>
    %199 = vector.shape_cast %198 : vector<1xf32> to vector<1x1x1xf32>
    %200 = vector.extract %199[0, 0, 0] : f32 from vector<1x1x1xf32>
    %201 = arith.mulf %196, %196 : vector<4x256xf32>
    %202 = vector.shape_cast %201 : vector<4x256xf32> to vector<1x4x256xf32>
    %cst_105 = arith.constant dense<0.000000e+00> : vector<1xf32>
    %203 = vector.multi_reduction <add>, %202, %cst_105 [1, 2] : vector<1x4x256xf32> to vector<1xf32>
    %204 = vector.shape_cast %203 : vector<1xf32> to vector<1x1x1xf32>
    %205 = vector.extract %204[0, 0, 0] : f32 from vector<1x1x1xf32>
    %cst_106 = arith.constant 1.024000e+03 : f32
    %206 = arith.divf %200, %cst_106 : f32
    %cst_107 = arith.constant 1.024000e+03 : f32
    %207 = arith.divf %205, %cst_107 : f32
    %208 = arith.mulf %206, %206 : f32
    %209 = arith.subf %207, %208 : f32
    %cst_108 = arith.constant 0.000000e+00 : f32
    %210 = arith.maximumf %209, %cst_108 : f32
    %211 = vector.broadcast %206 : f32 to vector<4x256xf32>
    %212 = arith.subf %196, %211 : vector<4x256xf32>
    %cst_109 = arith.constant 9.99999974E-6 : f32
    %213 = arith.addf %210, %cst_109 : f32
    %214 = math.rsqrt %213 : f32
    %215 = vector.broadcast %214 : f32 to vector<4x256xf32>
    %216 = arith.mulf %212, %215 : vector<4x256xf32>
    %217 = vector.broadcast %157 : vector<4x1xf32> to vector<4x256xf32>
    %218 = arith.mulf %216, %217 : vector<4x256xf32>
    %219 = vector.broadcast %158 : vector<4x1xf32> to vector<4x256xf32>
    %220 = arith.addf %218, %219 : vector<4x256xf32>
    %cst_110 = arith.constant 5.000000e-01 : f32
    %221 = vector.broadcast %cst_110 : f32 to vector<4x256xf32>
    %222 = arith.mulf %221, %220 : vector<4x256xf32>
    %cst_111 = arith.constant 4.471500e-02 : f32
    %223 = vector.broadcast %cst_111 : f32 to vector<4x256xf32>
    %224 = arith.mulf %223, %220 : vector<4x256xf32>
    %225 = arith.mulf %224, %220 : vector<4x256xf32>
    %226 = arith.mulf %225, %220 : vector<4x256xf32>
    %227 = arith.addf %220, %226 : vector<4x256xf32>
    %cst_112 = arith.constant 0.797884583 : f32
    %228 = vector.broadcast %cst_112 : f32 to vector<4x256xf32>
    %229 = arith.mulf %228, %227 : vector<4x256xf32>
    %230 = math.tanh %229 : vector<4x256xf32>
    %cst_113 = arith.constant 1.000000e+00 : f32
    %231 = vector.broadcast %cst_113 : f32 to vector<4x256xf32>
    %232 = arith.addf %231, %230 : vector<4x256xf32>
    %233 = arith.mulf %222, %232 : vector<4x256xf32>
    %c0_114 = arith.constant 0 : index
    %c6_115 = arith.constant 6 : index
    %234 = vector.load %arg9[%c0_114, %c6_115] : memref<16x9xf32, #tpu.memory_space<vmem>>, vector<9x1xf32>
    %c0_116 = arith.constant 0 : index
    %c7_117 = arith.constant 7 : index
    %235 = vector.load %arg9[%c0_116, %c7_117] : memref<16x9xf32, #tpu.memory_space<vmem>>, vector<9x1xf32>
    %c0_118 = arith.constant 0 : index
    %c0_119 = arith.constant 0 : index
    %236 = vector.load %arg8[%c0_118, %c0_119] : memref<9x36xf32, #tpu.memory_space<vmem>>, vector<9x36xf32>
    %c17_i32_120 = arith.constant 17 : i32
    %237 = tpu.dynamic_rotate %233 by %c17_i32_120 dim 1 : vector<4x256xf32>, i32 -> vector<4x256xf32>
    %c0_121 = arith.constant 0 : index
    %c0_122 = arith.constant 0 : index
    %238 = vector.load %arg4[%c0_121, %c0_122] : memref<9x256xf32, #tpu.memory_space<vmem>>, vector<1x256xf32>
    %239 = vector.broadcast %238 : vector<1x256xf32> to vector<4x256xf32>
    %240 = arith.mulf %237, %239 : vector<4x256xf32>
    %c16_i32_123 = arith.constant 16 : i32
    %241 = tpu.dynamic_rotate %233 by %c16_i32_123 dim 1 : vector<4x256xf32>, i32 -> vector<4x256xf32>
    %c1_124 = arith.constant 1 : index
    %c0_125 = arith.constant 0 : index
    %242 = vector.load %arg4[%c1_124, %c0_125] : memref<9x256xf32, #tpu.memory_space<vmem>>, vector<1x256xf32>
    %243 = vector.broadcast %242 : vector<1x256xf32> to vector<4x256xf32>
    %244 = arith.mulf %241, %243 : vector<4x256xf32>
    %c15_i32_126 = arith.constant 15 : i32
    %245 = tpu.dynamic_rotate %233 by %c15_i32_126 dim 1 : vector<4x256xf32>, i32 -> vector<4x256xf32>
    %c2_127 = arith.constant 2 : index
    %c0_128 = arith.constant 0 : index
    %246 = vector.load %arg4[%c2_127, %c0_128] : memref<9x256xf32, #tpu.memory_space<vmem>>, vector<1x256xf32>
    %247 = vector.broadcast %246 : vector<1x256xf32> to vector<4x256xf32>
    %248 = arith.mulf %245, %247 : vector<4x256xf32>
    %c1_i32_129 = arith.constant 1 : i32
    %249 = tpu.dynamic_rotate %233 by %c1_i32_129 dim 1 : vector<4x256xf32>, i32 -> vector<4x256xf32>
    %c3_130 = arith.constant 3 : index
    %c0_131 = arith.constant 0 : index
    %250 = vector.load %arg4[%c3_130, %c0_131] : memref<9x256xf32, #tpu.memory_space<vmem>>, vector<1x256xf32>
    %251 = vector.broadcast %250 : vector<1x256xf32> to vector<4x256xf32>
    %252 = arith.mulf %249, %251 : vector<4x256xf32>
    %c4_132 = arith.constant 4 : index
    %c0_133 = arith.constant 0 : index
    %253 = vector.load %arg4[%c4_132, %c0_133] : memref<9x256xf32, #tpu.memory_space<vmem>>, vector<1x256xf32>
    %254 = vector.broadcast %253 : vector<1x256xf32> to vector<4x256xf32>
    %255 = arith.mulf %233, %254 : vector<4x256xf32>
    %c255_i32_134 = arith.constant 255 : i32
    %256 = tpu.dynamic_rotate %233 by %c255_i32_134 dim 1 : vector<4x256xf32>, i32 -> vector<4x256xf32>
    %c5_135 = arith.constant 5 : index
    %c0_136 = arith.constant 0 : index
    %257 = vector.load %arg4[%c5_135, %c0_136] : memref<9x256xf32, #tpu.memory_space<vmem>>, vector<1x256xf32>
    %258 = vector.broadcast %257 : vector<1x256xf32> to vector<4x256xf32>
    %259 = arith.mulf %256, %258 : vector<4x256xf32>
    %c241_i32_137 = arith.constant 241 : i32
    %260 = tpu.dynamic_rotate %233 by %c241_i32_137 dim 1 : vector<4x256xf32>, i32 -> vector<4x256xf32>
    %c6_138 = arith.constant 6 : index
    %c0_139 = arith.constant 0 : index
    %261 = vector.load %arg4[%c6_138, %c0_139] : memref<9x256xf32, #tpu.memory_space<vmem>>, vector<1x256xf32>
    %262 = vector.broadcast %261 : vector<1x256xf32> to vector<4x256xf32>
    %263 = arith.mulf %260, %262 : vector<4x256xf32>
    %c240_i32_140 = arith.constant 240 : i32
    %264 = tpu.dynamic_rotate %233 by %c240_i32_140 dim 1 : vector<4x256xf32>, i32 -> vector<4x256xf32>
    %c7_141 = arith.constant 7 : index
    %c0_142 = arith.constant 0 : index
    %265 = vector.load %arg4[%c7_141, %c0_142] : memref<9x256xf32, #tpu.memory_space<vmem>>, vector<1x256xf32>
    %266 = vector.broadcast %265 : vector<1x256xf32> to vector<4x256xf32>
    %267 = arith.mulf %264, %266 : vector<4x256xf32>
    %c239_i32_143 = arith.constant 239 : i32
    %268 = tpu.dynamic_rotate %233 by %c239_i32_143 dim 1 : vector<4x256xf32>, i32 -> vector<4x256xf32>
    %c8_144 = arith.constant 8 : index
    %c0_145 = arith.constant 0 : index
    %269 = vector.load %arg4[%c8_144, %c0_145] : memref<9x256xf32, #tpu.memory_space<vmem>>, vector<1x256xf32>
    %270 = vector.broadcast %269 : vector<1x256xf32> to vector<4x256xf32>
    %271 = arith.mulf %268, %270 : vector<4x256xf32>
    %272 = tpu.concatenate %240, %244, %248, %252, %255, %259, %263, %267, %271 in 0 : vector<4x256xf32>, vector<4x256xf32>, vector<4x256xf32>, vector<4x256xf32>, vector<4x256xf32>, vector<4x256xf32>, vector<4x256xf32>, vector<4x256xf32>, vector<4x256xf32> -> vector<36x256xf32>
    %cst_146 = arith.constant dense<0.000000e+00> : vector<9x256xf32>
    %273 = tpu.matmul %236, %272, %cst_146 {dimension_numbers = #tpu.dot_dimension_numbers<[1], [0], [0], [1], [0, 0, 1, 1], [], []>} : vector<9x36xf32>, vector<36x256xf32>, vector<9x256xf32> -> vector<9x256xf32>
    %274 = vector.shape_cast %273 : vector<9x256xf32> to vector<1x9x256xf32>
    %cst_147 = arith.constant dense<0.000000e+00> : vector<1xf32>
    %275 = vector.multi_reduction <add>, %274, %cst_147 [1, 2] : vector<1x9x256xf32> to vector<1xf32>
    %276 = vector.shape_cast %275 : vector<1xf32> to vector<1x1x1xf32>
    %277 = vector.extract %276[0, 0, 0] : f32 from vector<1x1x1xf32>
    %278 = arith.mulf %273, %273 : vector<9x256xf32>
    %279 = vector.shape_cast %278 : vector<9x256xf32> to vector<1x9x256xf32>
    %cst_148 = arith.constant dense<0.000000e+00> : vector<1xf32>
    %280 = vector.multi_reduction <add>, %279, %cst_148 [1, 2] : vector<1x9x256xf32> to vector<1xf32>
    %281 = vector.shape_cast %280 : vector<1xf32> to vector<1x1x1xf32>
    %282 = vector.extract %281[0, 0, 0] : f32 from vector<1x1x1xf32>
    %cst_149 = arith.constant 2.304000e+03 : f32
    %283 = arith.divf %277, %cst_149 : f32
    %cst_150 = arith.constant 2.304000e+03 : f32
    %284 = arith.divf %282, %cst_150 : f32
    %285 = arith.mulf %283, %283 : f32
    %286 = arith.subf %284, %285 : f32
    %cst_151 = arith.constant 0.000000e+00 : f32
    %287 = arith.maximumf %286, %cst_151 : f32
    %288 = vector.broadcast %283 : f32 to vector<9x256xf32>
    %289 = arith.subf %273, %288 : vector<9x256xf32>
    %cst_152 = arith.constant 9.99999974E-6 : f32
    %290 = arith.addf %287, %cst_152 : f32
    %291 = math.rsqrt %290 : f32
    %292 = vector.broadcast %291 : f32 to vector<9x256xf32>
    %293 = arith.mulf %289, %292 : vector<9x256xf32>
    %294 = vector.broadcast %234 : vector<9x1xf32> to vector<9x256xf32>
    %295 = arith.mulf %293, %294 : vector<9x256xf32>
    %296 = vector.broadcast %235 : vector<9x1xf32> to vector<9x256xf32>
    %297 = arith.addf %295, %296 : vector<9x256xf32>
    %c0_153 = arith.constant 0 : index
    %c0_154 = arith.constant 0 : index
    %c0_155 = arith.constant 0 : index
    %298 = vector.load %arg3[%c0_153, %c0_154, %c0_155] : memref<1x7x112xf32, #tpu.memory_space<vmem>>, vector<1x7x112xf32>
    %299 = vector.shape_cast %298 : vector<1x7x112xf32> to vector<7x112xf32>
    %c0_156 = arith.constant 0 : index
    %c0_157 = arith.constant 0 : index
    %300 = vector.load %arg10[%c0_156, %c0_157] : memref<112x256xf32, #tpu.memory_space<vmem>>, vector<112x256xf32>
    %cst_158 = arith.constant dense<0.000000e+00> : vector<7x256xf32>
    %301 = tpu.matmul %299, %300, %cst_158 {dimension_numbers = #tpu.dot_dimension_numbers<[1], [0], [0], [1], [0, 0, 1, 1], [], []>} : vector<7x112xf32>, vector<112x256xf32>, vector<7x256xf32> -> vector<7x256xf32>
    %c0_159 = arith.constant 0 : index
    %c0_160 = arith.constant 0 : index
    %302 = vector.load %arg11[%c0_159, %c0_160] : memref<7x256xf32, #tpu.memory_space<vmem>>, vector<7x256xf32>
    %303 = arith.addf %301, %302 : vector<7x256xf32>
    %c0_161 = arith.constant 0 : index
    %c0_162 = arith.constant 0 : index
    %c0_163 = arith.constant 0 : index
    %304 = vector.load %arg2[%c0_161, %c0_162, %c0_163] : memref<1x32x1xf32, #tpu.memory_space<vmem>>, vector<1x32x1xf32>
    %305 = vector.shape_cast %304 : vector<1x32x1xf32> to vector<32x1xf32>
    %306 = arith.negf %305 : vector<32x1xf32>
    %307 = math.exp %306 : vector<32x1xf32>
    %cst_164 = arith.constant 1.000000e+00 : f32
    %308 = vector.broadcast %cst_164 : f32 to vector<32x1xf32>
    %309 = arith.addf %308, %307 : vector<32x1xf32>
    %310 = arith.divf %308, %309 : vector<32x1xf32>
    %311 = arith.mulf %305, %310 : vector<32x1xf32>
    %c0_165 = arith.constant 0 : index
    %c0_166 = arith.constant 0 : index
    %312 = vector.load %arg12[%c0_165, %c0_166] : memref<16x32xf32, #tpu.memory_space<vmem>>, vector<16x32xf32>
    %cst_167 = arith.constant dense<0.000000e+00> : vector<16x1xf32>
    %313 = tpu.matmul %312, %311, %cst_167 {dimension_numbers = #tpu.dot_dimension_numbers<[1], [0], [0], [1], [0, 0, 1, 1], [], []>} : vector<16x32xf32>, vector<32x1xf32>, vector<16x1xf32> -> vector<16x1xf32>
    %c0_168 = arith.constant 0 : index
    %c8_169 = arith.constant 8 : index
    %314 = vector.load %arg9[%c0_168, %c8_169] : memref<16x9xf32, #tpu.memory_space<vmem>>, vector<16x1xf32>
    %315 = arith.addf %313, %314 : vector<16x1xf32>
    %316 = tpu.concatenate %297, %303 in 0 : vector<9x256xf32>, vector<7x256xf32> -> vector<16x256xf32>
    %317 = vector.broadcast %315 : vector<16x1xf32> to vector<16x256xf32>
    %318 = arith.addf %316, %317 : vector<16x256xf32>
    %c0_170 = arith.constant 0 : index
    %c0_171 = arith.constant 0 : index
    %c0_172 = arith.constant 0 : index
    %319 = vector.load %arg13[%c0_170, %c0_171, %c0_172] : memref<1x16x256xf32, #tpu.memory_space<vmem>>, vector<1x16x256xf32>
    %320 = vector.shape_cast %319 : vector<1x16x256xf32> to vector<16x256xf32>
    %321 = vector.shape_cast %318 : vector<16x256xf32> to vector<1x16x256xf32>
    tpu.vector_store %arg13[%c0_170, %c0_171, %c0_172], %321 {strides = array<i32>} : memref<1x16x256xf32, #tpu.memory_space<vmem>>, vector<1x16x256xf32>,
    return
  }
  func.func @transform_0(%arg0: i32) -> (i32, i32, i32) {
    %c0_i32 = arith.constant 0 : i32
    %c0_i32_0 = arith.constant 0 : i32
    %c0_i32_1 = arith.constant 0 : i32
    return %arg0, %c0_i32, %c0_i32_0 : i32, i32, i32
  }
  func.func @transform_1(%arg0: i32) -> (i32, i32, i32) {
    %c0_i32 = arith.constant 0 : i32
    %c0_i32_0 = arith.constant 0 : i32
    %c0_i32_1 = arith.constant 0 : i32
    return %arg0, %c0_i32, %c0_i32_0 : i32, i32, i32
  }
  func.func @transform_2(%arg0: i32) -> (i32, i32, i32) {
    %c0_i32 = arith.constant 0 : i32
    %c0_i32_0 = arith.constant 0 : i32
    %c0_i32_1 = arith.constant 0 : i32
    return %arg0, %c0_i32, %c0_i32_0 : i32, i32, i32
  }
  func.func @transform_3(%arg0: i32) -> (i32, i32) {
    %c0_i32 = arith.constant 0 : i32
    %c0_i32_0 = arith.constant 0 : i32
    %c0_i32_1 = arith.constant 0 : i32
    return %c0_i32, %c0_i32_0 : i32, i32
  }
  func.func @transform_4(%arg0: i32) -> (i32, i32) {
    %c0_i32 = arith.constant 0 : i32
    %c0_i32_0 = arith.constant 0 : i32
    %c0_i32_1 = arith.constant 0 : i32
    return %c0_i32, %c0_i32_0 : i32, i32
  }
  func.func @transform_5(%arg0: i32) -> (i32, i32) {
    %c0_i32 = arith.constant 0 : i32
    %c0_i32_0 = arith.constant 0 : i32
    %c0_i32_1 = arith.constant 0 : i32
    return %c0_i32, %c0_i32_0 : i32, i32
  }
  func.func @transform_6(%arg0: i32) -> (i32, i32) {
    %c0_i32 = arith.constant 0 : i32
    %c0_i32_0 = arith.constant 0 : i32
    %c0_i32_1 = arith.constant 0 : i32
    return %c0_i32, %c0_i32_0 : i32, i32
  }
  func.func @transform_7(%arg0: i32) -> (i32, i32) {
    %c0_i32 = arith.constant 0 : i32
    %c0_i32_0 = arith.constant 0 : i32
    %c0_i32_1 = arith.constant 0 : i32
    return %c0_i32, %c0_i32_0 : i32, i32
  }
  func.func @transform_8(%arg0: i32) -> (i32, i32) {
    %c0_i32 = arith.constant 0 : i32
    %c0_i32_0 = arith.constant 0 : i32
    %c0_i32_1 = arith.constant 0 : i32
    return %c0_i32, %c0_i32_0 : i32, i32
  }
  func.func @transform_9(%arg0: i32) -> (i32, i32) {
    %c0_i32 = arith.constant 0 : i32
    %c0_i32_0 = arith.constant 0 : i32
    %c0_i32_1 = arith.constant 0 : i32
    return %c0_i32, %c0_i32_0 : i32, i32
  }
  func.func @transform_10(%arg0: i32) -> (i32, i32) {
    %c0_i32 = arith.constant 0 : i32
    %c0_i32_0 = arith.constant 0 : i32
    %c0_i32_1 = arith.constant 0 : i32
    return %c0_i32, %c0_i32_0 : i32, i32
  }
  func.func @transform_11(%arg0: i32) -> (i32, i32) {
    %c0_i32 = arith.constant 0 : i32
    %c0_i32_0 = arith.constant 0 : i32
    %c0_i32_1 = arith.constant 0 : i32
    return %c0_i32, %c0_i32_0 : i32, i32
  }
  func.func @transform_12(%arg0: i32) -> (i32, i32, i32) {
    %c0_i32 = arith.constant 0 : i32
    %c0_i32_0 = arith.constant 0 : i32
    %c0_i32_1 = arith.constant 0 : i32
    return %arg0, %c0_i32, %c0_i32_0 : i32, i32, i32
  }
}

</mosaic_0001>

<llo_original>
// kernel: tpu_custom_call.1
$region0: #{tpu_custom_call.1}
  #allocation0 [shape = 'u32[]', space=smem, size = 0x4, offset = 0x4, fixed_abs, tag = 'smem constant byte address 0x4 - core index']
  #allocation1 [shape = 'u32[72,128]{1,0:T(1,128)}', space=vmem, size = 0x9000, scoped, tag = 'internal scratch']
  %s0 = inlined_call_operand.vmem [shape: f32[2,8,256], index: 0, kind: input, shape index: {}]
  %s1 = inlined_call_operand.vmem [shape: f32[2,32,1], index: 1, kind: input, shape index: {}]
  %s2 = inlined_call_operand.vmem [shape: f32[2,7,112], index: 2, kind: input, shape index: {}]
  %s3 = inlined_call_operand.vmem [shape: f32[9,256], index: 3, kind: input, shape index: {}]
  %s4 = inlined_call_operand.hbm [shape: f32[8,72], index: 4, kind: input, shape index: {}]
  %s5 = inlined_call_operand.hbm [shape: f32[8,72], index: 5, kind: input, shape index: {}]
  %s6 = inlined_call_operand.hbm [shape: f32[4,72], index: 6, kind: input, shape index: {}]
  %s7 = inlined_call_operand.vmem [shape: f32[9,36], index: 7, kind: input, shape index: {}]
  %s8 = inlined_call_operand.vmem [shape: f32[16,9], index: 8, kind: input, shape index: {}]
  %s9 = inlined_call_operand.hbm [shape: f32[112,256], index: 9, kind: input, shape index: {}]
  %s10 = inlined_call_operand.hbm [shape: f32[7,256], index: 10, kind: input, shape index: {}]
  %s11 = inlined_call_operand.hbm [shape: f32[16,32], index: 11, kind: input, shape index: {}]
  %s12 = inlined_call_operand.hbm [shape: f32[2,16,256], index: 12, kind: output, shape index: {}]
  %s13 = sld [smem:[#allocation0]]
  $region105: #{tpu_custom_call.1} parent=0
    _
  %s15 = ssub.s32 1, %s13
  %s16 = scalar_select 0, %s15, %s13
  $region1: #{tpu_custom_call.1} parent=0
    #allocation2 [shape = 'u8[4096]{0}', space=vmem, size = 0x1000, scoped, tag = 'input window, operand 4, single buffered']
    #allocation3 [shape = 's32[2]{0}', space=sflag, size = 0x8, scoped, tag = 'scoped memory for tpu_custom_call.1']
    #allocation4 [shape = 's32[2]{0}', space=sflag, size = 0x8, scoped, tag = 'scoped memory for tpu_custom_call.1']
    #allocation5 [shape = 'u8[4096]{0}', space=vmem, size = 0x1000, scoped, tag = 'input window, operand 5, single buffered']
    #allocation6 [shape = 's32[1]{0}', space=sflag, size = 0x4, scoped, tag = 'scoped memory for tpu_custom_call.1']
    #allocation7 [shape = 'u8[2048]{0}', space=vmem, size = 0x800, scoped, tag = 'input window, operand 6, single buffered']
    #allocation8 [shape = 'u8[114688]{0}', space=vmem, size = 0x1c000, scoped, tag = 'input window, operand 9, single buffered']
    #allocation9 [shape = 's32[1]{0}', space=sflag, size = 0x4, scoped, tag = 'scoped memory for tpu_custom_call.1']
    #allocation10 [shape = 'u8[8192]{0}', space=vmem, size = 0x2000, scoped, tag = 'input window, operand 10, single buffered']
    #allocation11 [shape = 'u8[8192]{0}', space=vmem, size = 0x2000, scoped, tag = 'input window, operand 11, single buffered']
    #allocation12 [shape = 's32[1]{0}', space=sflag, size = 0x4, scoped, tag = 'scoped memory for tpu_custom_call.1']
    #allocation13 [shape = 'u8[32768]{0}', space=vmem, size = 0x8000, scoped, tag = 'output window, operand 0']
    %17 = vsyncpa [#allocation3], 0
    %18 = vsyncpa [#allocation6], 0
    %19 = vsyncpa [#allocation9], 0
    %20 = vsyncpa [#allocation12], 0
    %21 = vsyncpa [#allocation4], 0
    %s22 = scalar_lea.sflag [#allocation4], 1
    %23 = vsyncpa %s22, 0
    loop: start=0, step=1, limit=4
    $region2: #{tpu_custom_call.1} parent=1 // loop_pre_header
      _
    $region3: #{tpu_custom_call.1} parent=1 // loop_header
      %s25 = sphi 0, %s29
      %p26 = scmp.ge.s32.totalorder %s25, 4
      %s35 = sphi 0, %s37
      %s38 = sphi 0, %s35
      %s39 = sphi 0, %s38
      %s55 = sphi 0, %s39
      %s61 = sphi 0, %s63
      %s64 = sphi 0, %s61
      %s65 = sphi 0, %s64
      %s81 = sphi 0, %s65
      %s87 = sphi 0, %s89
      %s90 = sphi 0, %s87
      %s91 = sphi 0, %s90
      %s107 = sphi 0, %s91
      %s111 = sphi 0, %s111
      %s113 = sphi 0, %s111
      %s114 = sphi 0, %s113
      %s128 = sphi 0, %s114
      %s132 = sphi 0, %s132
      %s134 = sphi 0, %s132
      %s135 = sphi 0, %s134
      %s149 = sphi 0, %s135
      %s153 = sphi 0, %s153
      %s155 = sphi 0, %s153
      %s156 = sphi 0, %s155
      %s170 = sphi 0, %s156
      %s174 = sphi 0, %s174
      %s176 = sphi 0, %s174
      %s177 = sphi 0, %s176
      %s191 = sphi 0, %s177
      %s195 = sphi 0, %s195
      %s197 = sphi 0, %s195
      %s198 = sphi 0, %s197
      %s212 = sphi 0, %s198
      %s216 = sphi 0, %s216
      %s218 = sphi 0, %s216
      %s219 = sphi 0, %s218
      %s233 = sphi 0, %s219
      %s237 = sphi 0, %s237
      %s239 = sphi 0, %s237
      %s240 = sphi 0, %s239
      %s254 = sphi 0, %s240
      %s258 = sphi 0, %s258
      %s260 = sphi 0, %s258
      %s261 = sphi 0, %s260
      %s275 = sphi 0, %s261
      %s279 = sphi 0, %s279
      %s281 = sphi 0, %s279
      %s282 = sphi 0, %s281
      %s296 = sphi 0, %s282
      %s302 = sphi 0, %s304
      %s305 = sphi 0, %s302
      %s306 = sphi 0, %s305
      %s322 = sphi 0, %s306
    $region4: #{tpu_custom_call.1} parent=1 // loop_header_branch
      %28 = sbr.rel (%p26) target = $region8
    $region5: #{tpu_custom_call.1} parent=1 // loop_body
      %s30 = ssub.s32 %s25, 1
      %s31 = ssub.s32 %s25, 2
      %s32 = sadd.s32 %s25, 1
      %s33 = ssub.s32 %s25, %s32
      %p34 = scmp.eq.s32.totalorder %s33, 0
      %s36 = sadd.s32 %s35, 1
      %s37 = scalar_select %p34, %s35, %s36
      %p40 = pneg %p34
      %p41 = scmp.eq.s32.totalorder %s25, 1
      %p42 = por %p40, %p41
      %p43 = scmp.ne.s32.totalorder %s35, %s38
      %p44 = scmp.eq.s32.totalorder %s25, 0
      %p45 = por %p43, %p44
      %p46 = scmp.ne.s32.totalorder %s35, %s38
      %p47 = scmp.eq.s32.totalorder %s30, 1
      %p48 = por %p46, %p47
      %p49 = scmp.ne.s32.totalorder %s38, %s39
      %p50 = scmp.eq.s32.totalorder %s30, 0
      %p51 = por %p49, %p50
      %p52 = scmp.ne.s32.totalorder %s38, %s39
      %p53 = scmp.eq.s32.totalorder %s31, 1
      %p54 = por %p52, %p53
      %p56 = scmp.ne.s32.totalorder %s39, %s55
      %p57 = scmp.eq.s32.totalorder %s31, 0
      %p58 = por %p56, %p57
      %s59 = ssub.s32 %s25, %s32
      %p60 = scmp.eq.s32.totalorder %s59, 0
      %s62 = sadd.s32 %s61, 1
      %s63 = scalar_select %p60, %s61, %s62
      %p66 = pneg %p60
      %p67 = scmp.eq.s32.totalorder %s25, 1
      %p68 = por %p66, %p67
      %p69 = scmp.ne.s32.totalorder %s61, %s64
      %p70 = scmp.eq.s32.totalorder %s25, 0
      %p71 = por %p69, %p70
      %p72 = scmp.ne.s32.totalorder %s61, %s64
      %p73 = scmp.eq.s32.totalorder %s30, 1
      %p74 = por %p72, %p73
      %p75 = scmp.ne.s32.totalorder %s64, %s65
      %p76 = scmp.eq.s32.totalorder %s30, 0
      %p77 = por %p75, %p76
      %p78 = scmp.ne.s32.totalorder %s64, %s65
      %p79 = scmp.eq.s32.totalorder %s31, 1
      %p80 = por %p78, %p79
      %p82 = scmp.ne.s32.totalorder %s65, %s81
      %p83 = scmp.eq.s32.totalorder %s31, 0
      %p84 = por %p82, %p83
      %s85 = ssub.s32 %s25, %s32
      %p86 = scmp.eq.s32.totalorder %s85, 0
      %s88 = sadd.s32 %s87, 1
      %s89 = scalar_select %p86, %s87, %s88
      %p92 = pneg %p86
      %p93 = scmp.eq.s32.totalorder %s25, 1
      %p94 = por %p92, %p93
      %p95 = scmp.ne.s32.totalorder %s87, %s90
      %p96 = scmp.eq.s32.totalorder %s25, 0
      %p97 = por %p95, %p96
      %p98 = scmp.ne.s32.totalorder %s87, %s90
      %p99 = scmp.eq.s32.totalorder %s30, 1
      %p100 = por %p98, %p99
      %p101 = scmp.ne.s32.totalorder %s90, %s91
      %p102 = scmp.eq.s32.totalorder %s30, 0
      %p103 = por %p101, %p102
      %p104 = scmp.ne.s32.totalorder %s90, %s91
      %p105 = scmp.eq.s32.totalorder %s31, 1
      %p106 = por %p104, %p105
      %p108 = scmp.ne.s32.totalorder %s91, %s107
      %p109 = scmp.eq.s32.totalorder %s31, 0
      %p110 = por %p108, %p109
      %s112 = sadd.s32 %s111, 1
      %p115 = scmp.eq.s32.totalorder %s25, 1
      %p116 = scmp.ne.s32.totalorder %s111, %s113
      %p117 = scmp.eq.s32.totalorder %s25, 0
      %p118 = por %p116, %p117
      %p119 = scmp.ne.s32.totalorder %s111, %s113
      %p120 = scmp.eq.s32.totalorder %s30, 1
      %p121 = por %p119, %p120
      %p122 = scmp.ne.s32.totalorder %s113, %s114
      %p123 = scmp.eq.s32.totalorder %s30, 0
      %p124 = por %p122, %p123
      %p125 = scmp.ne.s32.totalorder %s113, %s114
      %p126 = scmp.eq.s32.totalorder %s31, 1
      %p127 = por %p125, %p126
      %p129 = scmp.ne.s32.totalorder %s114, %s128
      %p130 = scmp.eq.s32.totalorder %s31, 0
      %p131 = por %p129, %p130
      %s133 = sadd.s32 %s132, 1
      %p136 = scmp.eq.s32.totalorder %s25, 1
      %p137 = scmp.ne.s32.totalorder %s132, %s134
      %p138 = scmp.eq.s32.totalorder %s25, 0
      %p139 = por %p137, %p138
      %p140 = scmp.ne.s32.totalorder %s132, %s134
      %p141 = scmp.eq.s32.totalorder %s30, 1
      %p142 = por %p140, %p141
      %p143 = scmp.ne.s32.totalorder %s134, %s135
      %p144 = scmp.eq.s32.totalorder %s30, 0
      %p145 = por %p143, %p144
      %p146 = scmp.ne.s32.totalorder %s134, %s135
      %p147 = scmp.eq.s32.totalorder %s31, 1
      %p148 = por %p146, %p147
      %p150 = scmp.ne.s32.totalorder %s135, %s149
      %p151 = scmp.eq.s32.totalorder %s31, 0
      %p152 = por %p150, %p151
      %s154 = sadd.s32 %s153, 1
      %p157 = scmp.eq.s32.totalorder %s25, 1
      %p158 = scmp.ne.s32.totalorder %s153, %s155
      %p159 = scmp.eq.s32.totalorder %s25, 0
      %p160 = por %p158, %p159
      %p161 = scmp.ne.s32.totalorder %s153, %s155
      %p162 = scmp.eq.s32.totalorder %s30, 1
      %p163 = por %p161, %p162
      %p164 = scmp.ne.s32.totalorder %s155, %s156
      %p165 = scmp.eq.s32.totalorder %s30, 0
      %p166 = por %p164, %p165
      %p167 = scmp.ne.s32.totalorder %s155, %s156
      %p168 = scmp.eq.s32.totalorder %s31, 1
      %p169 = por %p167, %p168
      %p171 = scmp.ne.s32.totalorder %s156, %s170
      %p172 = scmp.eq.s32.totalorder %s31, 0
      %p173 = por %p171, %p172
      %s175 = sadd.s32 %s174, 1
      %p178 = scmp.eq.s32.totalorder %s25, 1
      %p179 = scmp.ne.s32.totalorder %s174, %s176
      %p180 = scmp.eq.s32.totalorder %s25, 0
      %p181 = por %p179, %p180
      %p182 = scmp.ne.s32.totalorder %s174, %s176
      %p183 = scmp.eq.s32.totalorder %s30, 1
      %p184 = por %p182, %p183
      %p185 = scmp.ne.s32.totalorder %s176, %s177
      %p186 = scmp.eq.s32.totalorder %s30, 0
      %p187 = por %p185, %p186
      %p188 = scmp.ne.s32.totalorder %s176, %s177
      %p189 = scmp.eq.s32.totalorder %s31, 1
      %p190 = por %p188, %p189
      %p192 = scmp.ne.s32.totalorder %s177, %s191
      %p193 = scmp.eq.s32.totalorder %s31, 0
      %p194 = por %p192, %p193
      %s196 = sadd.s32 %s195, 1
      %p199 = scmp.eq.s32.totalorder %s25, 1
      %p200 = scmp.ne.s32.totalorder %s195, %s197
      %p201 = scmp.eq.s32.totalorder %s25, 0
      %p202 = por %p200, %p201
      %p203 = scmp.ne.s32.totalorder %s195, %s197
      %p204 = scmp.eq.s32.totalorder %s30, 1
      %p205 = por %p203, %p204
      %p206 = scmp.ne.s32.totalorder %s197, %s198
      %p207 = scmp.eq.s32.totalorder %s30, 0
      %p208 = por %p206, %p207
      %p209 = scmp.ne.s32.totalorder %s197, %s198
      %p210 = scmp.eq.s32.totalorder %s31, 1
      %p211 = por %p209, %p210
      %p213 = scmp.ne.s32.totalorder %s198, %s212
      %p214 = scmp.eq.s32.totalorder %s31, 0
      %p215 = por %p213, %p214
      %s217 = sadd.s32 %s216, 1
      %p220 = scmp.eq.s32.totalorder %s25, 1
      %p221 = scmp.ne.s32.totalorder %s216, %s218
      %p222 = scmp.eq.s32.totalorder %s25, 0
      %p223 = por %p221, %p222
      %p224 = scmp.ne.s32.totalorder %s216, %s218
      %p225 = scmp.eq.s32.totalorder %s30, 1
      %p226 = por %p224, %p225
      %p227 = scmp.ne.s32.totalorder %s218, %s219
      %p228 = scmp.eq.s32.totalorder %s30, 0
      %p229 = por %p227, %p228
      %p230 = scmp.ne.s32.totalorder %s218, %s219
      %p231 = scmp.eq.s32.totalorder %s31, 1
      %p232 = por %p230, %p231
      %p234 = scmp.ne.s32.totalorder %s219, %s233
      %p235 = scmp.eq.s32.totalorder %s31, 0
      %p236 = por %p234, %p235
      %s238 = sadd.s32 %s237, 1
      %p241 = scmp.eq.s32.totalorder %s25, 1
      %p242 = scmp.ne.s32.totalorder %s237, %s239
      %p243 = scmp.eq.s32.totalorder %s25, 0
      %p244 = por %p242, %p243
      %p245 = scmp.ne.s32.totalorder %s237, %s239
      %p246 = scmp.eq.s32.totalorder %s30, 1
      %p247 = por %p245, %p246
      %p248 = scmp.ne.s32.totalorder %s239, %s240
      %p249 = scmp.eq.s32.totalorder %s30, 0
      %p250 = por %p248, %p249
      %p251 = scmp.ne.s32.totalorder %s239, %s240
      %p252 = scmp.eq.s32.totalorder %s31, 1
      %p253 = por %p251, %p252
      %p255 = scmp.ne.s32.totalorder %s240, %s254
      %p256 = scmp.eq.s32.totalorder %s31, 0
      %p257 = por %p255, %p256
      %s259 = sadd.s32 %s258, 1
      %p262 = scmp.eq.s32.totalorder %s25, 1
      %p263 = scmp.ne.s32.totalorder %s258, %s260
      %p264 = scmp.eq.s32.totalorder %s25, 0
      %p265 = por %p263, %p264
      %p266 = scmp.ne.s32.totalorder %s258, %s260
      %p267 = scmp.eq.s32.totalorder %s30, 1
      %p268 = por %p266, %p267
      %p269 = scmp.ne.s32.totalorder %s260, %s261
      %p270 = scmp.eq.s32.totalorder %s30, 0
      %p271 = por %p269, %p270
      %p272 = scmp.ne.s32.totalorder %s260, %s261
      %p273 = scmp.eq.s32.totalorder %s31, 1
      %p274 = por %p272, %p273
      %p276 = scmp.ne.s32.totalorder %s261, %s275
      %p277 = scmp.eq.s32.totalorder %s31, 0
      %p278 = por %p276, %p277
      %s280 = sadd.s32 %s279, 1
      %p283 = scmp.eq.s32.totalorder %s25, 1
      %p284 = scmp.ne.s32.totalorder %s279, %s281
      %p285 = scmp.eq.s32.totalorder %s25, 0
      %p286 = por %p284, %p285
      %p287 = scmp.ne.s32.totalorder %s279, %s281
      %p288 = scmp.eq.s32.totalorder %s30, 1
      %p289 = por %p287, %p288
      %p290 = scmp.ne.s32.totalorder %s281, %s282
      %p291 = scmp.eq.s32.totalorder %s30, 0
      %p292 = por %p290, %p291
      %p293 = scmp.ne.s32.totalorder %s281, %s282
      %p294 = scmp.eq.s32.totalorder %s31, 1
      %p295 = por %p293, %p294
      %p297 = scmp.ne.s32.totalorder %s282, %s296
      %p298 = scmp.eq.s32.totalorder %s31, 0
      %p299 = por %p297, %p298
      %s300 = ssub.s32 %s25, %s32
      %p301 = scmp.eq.s32.totalorder %s300, 0
      %s303 = sadd.s32 %s302, 1
      %s304 = scalar_select %p301, %s302, %s303
      %p307 = pneg %p301
      %p308 = scmp.eq.s32.totalorder %s25, 1
      %p309 = por %p307, %p308
      %p310 = scmp.ne.s32.totalorder %s302, %s305
      %p311 = scmp.eq.s32.totalorder %s25, 0
      %p312 = por %p310, %p311
      %p313 = scmp.ne.s32.totalorder %s302, %s305
      %p314 = scmp.eq.s32.totalorder %s30, 1
      %p315 = por %p313, %p314
      %p316 = scmp.ne.s32.totalorder %s305, %s306
      %p317 = scmp.eq.s32.totalorder %s30, 0
      %p318 = por %p316, %p317
      %p319 = scmp.ne.s32.totalorder %s305, %s306
      %p320 = scmp.eq.s32.totalorder %s31, 1
      %p321 = por %p319, %p320
      %p323 = scmp.ne.s32.totalorder %s306, %s322
      %p324 = scmp.eq.s32.totalorder %s31, 0
      %p325 = por %p323, %p324
      %p326 = scmp.le.s32.totalorder 1, %s25
      %p327 = scmp.lt.s32.totalorder %s25, 3
      %p328 = pnand %p326, %p327
      %p329 = pneg %p328
      // Predicated region
      $region9: #{tpu_custom_call.1} parent=5 // pred_check
        _
      $region10: #{tpu_custom_call.1} parent=5 // pred_check_branch
        %331 = sbr.rel (%p328) target = $region12
      $region11: #{tpu_custom_call.1} parent=5 // pred_region
        %s332 = ssub.s32 %s25, 1
        // Predicated region
        $region13: #{tpu_custom_call.1} parent=11 // pred_check
          %p333 = pneg %p124
        $region14: #{tpu_custom_call.1} parent=11 // pred_check_branch
          %335 = sbr.rel (%p333) target = $region16
        $region15: #{tpu_custom_call.1} parent=11 // pred_region
          _
        $region16: #{tpu_custom_call.1} parent=11 // pred_fallthru
          _
        // Predicated region
        $region17: #{tpu_custom_call.1} parent=11 // pred_check
          %p336 = pneg %p145
        $region18: #{tpu_custom_call.1} parent=11 // pred_check_branch
          %338 = sbr.rel (%p336) target = $region20
        $region19: #{tpu_custom_call.1} parent=11 // pred_region
          %340 = vsyncadd [#allocation3], 0
          %s342 = sshll.u32 %s4, 4
          %s343 = int_to_ptr.hbm [resolvable:$true] %s342
          %s344 = sshll.u32 [#allocation2], 4
          %s345 = int_to_ptr.vmem [resolvable:$true] %s344
          %347 = dma.hbm_to_vmem [thread:$0]  %s343, 128, %s345, [#allocation3]
        $region20: #{tpu_custom_call.1} parent=11 // pred_fallthru
          _
        // Predicated region
        $region21: #{tpu_custom_call.1} parent=11 // pred_check
          %p348 = pneg %p166
        $region22: #{tpu_custom_call.1} parent=11 // pred_check_branch
          %350 = sbr.rel (%p348) target = $region24
        $region23: #{tpu_custom_call.1} parent=11 // pred_region
          %352 = vsyncadd [#allocation6], 0
          %s354 = sshll.u32 %s5, 4
          %s355 = int_to_ptr.hbm [resolvable:$true] %s354
          %s356 = sshll.u32 [#allocation5], 4
          %s357 = int_to_ptr.vmem [resolvable:$true] %s356
          %359 = dma.hbm_to_vmem [thread:$0]  %s355, 128, %s357, [#allocation6]
        $region24: #{tpu_custom_call.1} parent=11 // pred_fallthru
          _
        // Predicated region
        $region25: #{tpu_custom_call.1} parent=11 // pred_check
          %p360 = pneg %p187
        $region26: #{tpu_custom_call.1} parent=11 // pred_check_branch
          %362 = sbr.rel (%p360) target = $region28
        $region27: #{tpu_custom_call.1} parent=11 // pred_region
          %364 = vsyncadd [#allocation6], 0
          %s366 = sshll.u32 %s6, 4
          %s367 = int_to_ptr.hbm [resolvable:$true] %s366
          %s368 = sshll.u32 [#allocation7], 4
          %s369 = int_to_ptr.vmem [resolvable:$true] %s368
          %371 = dma.hbm_to_vmem [thread:$0]  %s367, 64, %s369, [#allocation6]
        $region28: #{tpu_custom_call.1} parent=11 // pred_fallthru
          _
        // Predicated region
        $region29: #{tpu_custom_call.1} parent=11 // pred_check
          %p372 = pneg %p208
        $region30: #{tpu_custom_call.1} parent=11 // pred_check_branch
          %374 = sbr.rel (%p372) target = $region32
        $region31: #{tpu_custom_call.1} parent=11 // pred_region
          _
        $region32: #{tpu_custom_call.1} parent=11 // pred_fallthru
          _
        // Predicated region
        $region33: #{tpu_custom_call.1} parent=11 // pred_check
          %p375 = pneg %p229
        $region34: #{tpu_custom_call.1} parent=11 // pred_check_branch
          %377 = sbr.rel (%p375) target = $region36
        $region35: #{tpu_custom_call.1} parent=11 // pred_region
          _
        $region36: #{tpu_custom_call.1} parent=11 // pred_fallthru
          _
        // Predicated region
        $region37: #{tpu_custom_call.1} parent=11 // pred_check
          %p378 = pneg %p250
        $region38: #{tpu_custom_call.1} parent=11 // pred_check_branch
          %380 = sbr.rel (%p378) target = $region40
        $region39: #{tpu_custom_call.1} parent=11 // pred_region
          %382 = vsyncadd [#allocation9], 0
          %s383 = sshll.u32 %s9, 4
          %s384 = int_to_ptr.hbm [resolvable:$true] %s383
          %s385 = sshll.u32 [#allocation8], 4
          %s386 = int_to_ptr.vmem [resolvable:$true] %s385
          %391 = dma.hbm_to_vmem [thread:$0]  %s384, 3584, %s386, [#allocation9], 256, 256, 16
        $region40: #{tpu_custom_call.1} parent=11 // pred_fallthru
          _
        // Predicated region
        $region41: #{tpu_custom_call.1} parent=11 // pred_check
          %p392 = pneg %p271
        $region42: #{tpu_custom_call.1} parent=11 // pred_check_branch
          %394 = sbr.rel (%p392) target = $region44
        $region43: #{tpu_custom_call.1} parent=11 // pred_region
          %396 = vsyncadd [#allocation9], 0
          %s398 = sshll.u32 %s10, 4
          %s399 = int_to_ptr.hbm [resolvable:$true] %s398
          %s400 = sshll.u32 [#allocation10], 4
          %s401 = int_to_ptr.vmem [resolvable:$true] %s400
          %403 = dma.hbm_to_vmem [thread:$0]  %s399, 256, %s401, [#allocation9]
        $region44: #{tpu_custom_call.1} parent=11 // pred_fallthru
          _
        // Predicated region
        $region45: #{tpu_custom_call.1} parent=11 // pred_check
          %p404 = pneg %p292
        $region46: #{tpu_custom_call.1} parent=11 // pred_check_branch
          %406 = sbr.rel (%p404) target = $region48
        $region47: #{tpu_custom_call.1} parent=11 // pred_region
          %408 = vsyncadd [#allocation12], 0
          %s409 = sshll.u32 %s11, 4
          %s410 = int_to_ptr.hbm [resolvable:$true] %s409
          %s411 = sshll.u32 [#allocation11], 4
          %s412 = int_to_ptr.vmem [resolvable:$true] %s411
          %417 = dma.hbm_to_vmem [thread:$0]  %s410, 256, %s412, [#allocation12], 128, 128, 8
        $region48: #{tpu_custom_call.1} parent=11 // pred_fallthru
          _
      $region12: #{tpu_custom_call.1} parent=5 // pred_fallthru
        _
      %p418 = scmp.lt.s32.totalorder %s25, 2
      // Predicated region
      $region49: #{tpu_custom_call.1} parent=5 // pred_check
        %p419 = pneg %p418
      $region50: #{tpu_custom_call.1} parent=5 // pred_check_branch
        %421 = sbr.rel (%p419) target = $region52
      $region51: #{tpu_custom_call.1} parent=5 // pred_region
        // Predicated region
        $region53: #{tpu_custom_call.1} parent=51 // pred_check
          %p422 = pneg %p45
        $region54: #{tpu_custom_call.1} parent=51 // pred_check_branch
          %424 = sbr.rel (%p422) target = $region56
        $region55: #{tpu_custom_call.1} parent=51 // pred_region
          %p425 = scmp.lt.s32.totalorder %s25, 1
          %s426 = scalar_select %p425, %s25, 1
          %s427 = smul.addr %s426, 2
          %s428 = smul.addr %s427, 8
          %s429 = scalar_lea.vmem %s0, %s428
        $region56: #{tpu_custom_call.1} parent=51 // pred_fallthru
          _
        // Predicated region
        $region57: #{tpu_custom_call.1} parent=51 // pred_check
          %p430 = pneg %p71
        $region58: #{tpu_custom_call.1} parent=51 // pred_check_branch
          %432 = sbr.rel (%p430) target = $region60
        $region59: #{tpu_custom_call.1} parent=51 // pred_region
          %p433 = scmp.lt.s32.totalorder %s25, 1
          %s434 = scalar_select %p433, %s25, 1
          %s435 = smul.addr %s434, 4
          %s436 = smul.addr %s435, 8
          %s437 = scalar_lea.vmem %s1, %s436
        $region60: #{tpu_custom_call.1} parent=51 // pred_fallthru
          _
        // Predicated region
        $region61: #{tpu_custom_call.1} parent=51 // pred_check
          %p438 = pneg %p97
        $region62: #{tpu_custom_call.1} parent=51 // pred_check_branch
          %440 = sbr.rel (%p438) target = $region64
        $region63: #{tpu_custom_call.1} parent=51 // pred_region
          %p441 = scmp.lt.s32.totalorder %s25, 1
          %s442 = scalar_select %p441, %s25, 1
          %s443 = smul.addr %s442, 8
          %s444 = scalar_lea.vmem %s2, %s443
        $region64: #{tpu_custom_call.1} parent=51 // pred_fallthru
          _
      $region52: #{tpu_custom_call.1} parent=5 // pred_fallthru
        _
      %p445 = scmp.le.s32.totalorder 1, %s25
      %p446 = scmp.lt.s32.totalorder %s25, 3
      %p447 = pnand %p445, %p446
      %p448 = pneg %p447
      // Predicated region
      $region65: #{tpu_custom_call.1} parent=5 // pred_check
        _
      $region66: #{tpu_custom_call.1} parent=5 // pred_check_branch
        %450 = sbr.rel (%p447) target = $region68
      $region67: #{tpu_custom_call.1} parent=5 // pred_region
        %s451 = ssub.s32 %s25, 1
        // Predicated region
        $region69: #{tpu_custom_call.1} parent=67 // pred_check
          %p452 = pneg %p145
        $region70: #{tpu_custom_call.1} parent=67 // pred_check_branch
          %454 = sbr.rel (%p452) target = $region72
        $region71: #{tpu_custom_call.1} parent=67 // pred_region
          %456 = dma.done [#allocation3], 128
        $region72: #{tpu_custom_call.1} parent=67 // pred_fallthru
          _
        // Predicated region
        $region73: #{tpu_custom_call.1} parent=67 // pred_check
          %p457 = pneg %p166
        $region74: #{tpu_custom_call.1} parent=67 // pred_check_branch
          %459 = sbr.rel (%p457) target = $region76
        $region75: #{tpu_custom_call.1} parent=67 // pred_region
          %461 = dma.done [#allocation6], 128
        $region76: #{tpu_custom_call.1} parent=67 // pred_fallthru
          _
        // Predicated region
        $region77: #{tpu_custom_call.1} parent=67 // pred_check
          %p462 = pneg %p187
        $region78: #{tpu_custom_call.1} parent=67 // pred_check_branch
          %464 = sbr.rel (%p462) target = $region80
        $region79: #{tpu_custom_call.1} parent=67 // pred_region
          %466 = dma.done [#allocation6], 64
        $region80: #{tpu_custom_call.1} parent=67 // pred_fallthru
          _
        // Predicated region
        $region81: #{tpu_custom_call.1} parent=67 // pred_check
          %p467 = pneg %p250
        $region82: #{tpu_custom_call.1} parent=67 // pred_check_branch
          %469 = sbr.rel (%p467) target = $region84
        $region83: #{tpu_custom_call.1} parent=67 // pred_region
          %471 = dma.done [#allocation9], 3584
        $region84: #{tpu_custom_call.1} parent=67 // pred_fallthru
          _
        // Predicated region
        $region85: #{tpu_custom_call.1} parent=67 // pred_check
          %p472 = pneg %p271
        $region86: #{tpu_custom_call.1} parent=67 // pred_check_branch
          %474 = sbr.rel (%p472) target = $region88
        $region87: #{tpu_custom_call.1} parent=67 // pred_region
          %476 = dma.done [#allocation9], 256
        $region88: #{tpu_custom_call.1} parent=67 // pred_fallthru
          _
        // Predicated region
        $region89: #{tpu_custom_call.1} parent=67 // pred_check
          %p477 = pneg %p292
        $region90: #{tpu_custom_call.1} parent=67 // pred_check_branch
          %479 = sbr.rel (%p477) target = $region92
        $region91: #{tpu_custom_call.1} parent=67 // pred_region
          %481 = dma.done [#allocation12], 256
        $region92: #{tpu_custom_call.1} parent=67 // pred_fallthru
          _
        %p482 = scmp.lt.s32.totalorder %s30, 1
        %s483 = scalar_select %p482, %s30, 1
        %s484 = smul.addr %s483, 2
        %s485 = smul.addr %s484, 8
        %s486 = scalar_lea.vmem %s0, %s485
        %p487 = pneg %p51
        %p488 = pneg %p48
        %p489 = scmp.lt.s32.totalorder %s30, 1
        %s490 = scalar_select %p489, %s30, 1
        %s491 = smul.addr %s490, 4
        %s492 = smul.addr %s491, 8
        %s493 = scalar_lea.vmem %s1, %s492
        %p494 = pneg %p77
        %p495 = pneg %p74
        %p496 = scmp.lt.s32.totalorder %s30, 1
        %s497 = scalar_select %p496, %s30, 1
        %s498 = smul.addr %s497, 8
        %s499 = scalar_lea.vmem %s2, %s498
        %p500 = pneg %p103
        %p501 = pneg %p100
        %p502 = pneg %p124
        %p503 = pneg %p121
        %p504 = pneg %p145
        %p505 = pneg %p142
        %p506 = pneg %p166
        %p507 = pneg %p163
        %p508 = pneg %p187
        %p509 = pneg %p184
        %p510 = pneg %p208
        %p511 = pneg %p205
        %p512 = pneg %p229
        %p513 = pneg %p226
        %p514 = pneg %p250
        %p515 = pneg %p247
        %p516 = pneg %p271
        %p517 = pneg %p268
        %p518 = pneg %p292
        %p519 = pneg %p289
        %p520 = pneg %p318
        %p521 = pneg %p315
        %s522 = sand.u32 %s305, 1
        %s523 = scalar_lea.sflag [#allocation4], %s522
        %s524 = sand.u32 %s305, 1
        %s525 = smul.addr %s524, 32
        %s526 = scalar_lea.vmem [#allocation13], %s525
        %p527 = scmp.lt.s32.totalorder %s30, 1
        %s528 = scalar_select %p527, %s30, 1
        %s529 = smul.addr %s528, 2
        %s530 = smul.addr %s529, 8
        %s531 = scalar_lea.vmem %s0, %s530
        %p532 = scmp.lt.s32.totalorder %s30, 1
        %s533 = scalar_select %p532, %s30, 1
        %s534 = smul.addr %s533, 4
        %s535 = smul.addr %s534, 8
        %s536 = scalar_lea.vmem %s1, %s535
        %p537 = scmp.lt.s32.totalorder %s30, 1
        %s538 = scalar_select %p537, %s30, 1
        %s539 = smul.addr %s538, 8
        %s540 = scalar_lea.vmem %s2, %s539
        %v541 = vld [vmem:[%s531] sm:$0xff]
        %v542 = vld [vmem:[%s531 + $0x8] sm:$0xff]
        %v543 = vld [vmem:[%s8] sm:$0xff]
        %v544 = vld [vmem:[#allocation2] sm:$0xff]
        %545 = vrot.lane.b32.xlu0 %v541, 17
        %v546 = vpop.permute.xlu0 %545
        %547 = vrot.lane.b32.xlu0 %v542, 17
        %v548 = vpop.permute.xlu0 %547
        %v549 = vlaneseq
        %v550 = vand.u32 %v549, 127
        %vm551 = vcmp.lt.s32.totalorder %v550, 17
        %v552 = vsel %vm551, %v546, %v548
        %v553 = vsel %vm551, %v548, %v546
        %v554 = vld [vmem:[%s3] ss:$8 sm:$0x3]
        %v556 = vperm.slane %v554, 0
        %v557 = vperm.slane %v554, 1
        %v560 = vmul.f32 %v553, %v556
        %v561 = vmul.f32 %v552, %v557
        %562 = vrot.lane.b32.xlu0 %v541, 16
        %v563 = vpop.permute.xlu0 %562
        %564 = vrot.lane.b32.xlu0 %v542, 16
        %v565 = vpop.permute.xlu0 %564
        %vm566 = vcmp.lt.s32.totalorder %v550, 16
        %v567 = vsel %vm566, %v563, %v565
        %v568 = vsel %vm566, %v565, %v563
        %s569 = scalar_lea.vmem %s3, 1
        %v570 = vld [vmem:[%s569] ss:$8 sm:$0x3]
        %v572 = vperm.slane %v570, 0
        %v573 = vperm.slane %v570, 1
        %v576 = vmul.f32 %v568, %v572
        %v577 = vmul.f32 %v567, %v573
        %578 = vrot.lane.b32.xlu0 %v541, 15
        %v579 = vpop.permute.xlu0 %578
        %580 = vrot.lane.b32.xlu0 %v542, 15
        %v581 = vpop.permute.xlu0 %580
        %vm582 = vcmp.lt.s32.totalorder %v550, 15
        %v583 = vsel %vm582, %v579, %v581
        %v584 = vsel %vm582, %v581, %v579
        %s585 = scalar_lea.vmem %s3, 2
        %v586 = vld [vmem:[%s585] ss:$8 sm:$0x3]
        %v588 = vperm.slane %v586, 0
        %v589 = vperm.slane %v586, 1
        %v592 = vmul.f32 %v584, %v588
        %v593 = vmul.f32 %v583, %v589
        %594 = vrot.lane.b32.xlu0 %v541, 1
        %v595 = vpop.permute.xlu0 %594
        %596 = vrot.lane.b32.xlu0 %v542, 1
        %v597 = vpop.permute.xlu0 %596
        %vm598 = vcmp.lt.s32.totalorder %v550, 1
        %v599 = vsel %vm598, %v595, %v597
        %v600 = vsel %vm598, %v597, %v595
        %s601 = scalar_lea.vmem %s3, 3
        %v602 = vld [vmem:[%s601] ss:$8 sm:$0x3]
        %v604 = vperm.slane %v602, 0
        %v605 = vperm.slane %v602, 1
        %v608 = vmul.f32 %v600, %v604
        %v609 = vmul.f32 %v599, %v605
        %s610 = scalar_lea.vmem %s3, 4
        %v611 = vld [vmem:[%s610] ss:$8 sm:$0x3]
        %v613 = vperm.slane %v611, 0
        %v614 = vperm.slane %v611, 1
        %v617 = vmul.f32 %v541, %v613
        %v618 = vmul.f32 %v542, %v614
        %619 = vrot.lane.b32.xlu0 %v541, 127
        %v620 = vpop.permute.xlu0 %619
        %621 = vrot.lane.b32.xlu0 %v542, 127
        %v622 = vpop.permute.xlu0 %621
        %vm623 = vcmp.lt.s32.totalorder %v550, 127
        %v624 = vsel %vm623, %v620, %v622
        %v625 = vsel %vm623, %v622, %v620
        %s626 = scalar_lea.vmem %s3, 5
        %v627 = vld [vmem:[%s626] ss:$8 sm:$0x3]
        %v629 = vperm.slane %v627, 0
        %v630 = vperm.slane %v627, 1
        %v633 = vmul.f32 %v624, %v629
        %v634 = vmul.f32 %v625, %v630
        %635 = vrot.lane.b32.xlu0 %v541, 113
        %v636 = vpop.permute.xlu0 %635
        %637 = vrot.lane.b32.xlu0 %v542, 113
        %v638 = vpop.permute.xlu0 %637
        %vm639 = vcmp.lt.s32.totalorder %v550, 113
        %v640 = vsel %vm639, %v636, %v638
        %v641 = vsel %vm639, %v638, %v636
        %s642 = scalar_lea.vmem %s3, 6
        %v643 = vld [vmem:[%s642] ss:$8 sm:$0x3]
        %v645 = vperm.slane %v643, 0
        %v646 = vperm.slane %v643, 1
        %v649 = vmul.f32 %v640, %v645
        %v650 = vmul.f32 %v641, %v646
        %651 = vrot.lane.b32.xlu0 %v541, 112
        %v652 = vpop.permute.xlu0 %651
        %653 = vrot.lane.b32.xlu0 %v542, 112
        %v654 = vpop.permute.xlu0 %653
        %vm655 = vcmp.lt.s32.totalorder %v550, 112
        %v656 = vsel %vm655, %v652, %v654
        %v657 = vsel %vm655, %v654, %v652
        %s658 = scalar_lea.vmem %s3, 7
        %v659 = vld [vmem:[%s658] ss:$8 sm:$0x3]
        %v661 = vperm.slane %v659, 0
        %v662 = vperm.slane %v659, 1
        %v665 = vmul.f32 %v656, %v661
        %v666 = vmul.f32 %v657, %v662
        %667 = vrot.lane.b32.xlu0 %v541, 111
        %v668 = vpop.permute.xlu0 %667
        %669 = vrot.lane.b32.xlu0 %v542, 111
        %v670 = vpop.permute.xlu0 %669
        %vm671 = vcmp.lt.s32.totalorder %v550, 111
        %v672 = vsel %vm671, %v668, %v670
        %v673 = vsel %vm671, %v670, %v668
        %s674 = scalar_lea.vmem %s3, 16
        %v675 = vld [vmem:[%s674] ss:$8 sm:$0x3]
        %v677 = vperm.slane %v675, 0
        %v678 = vperm.slane %v675, 1
        %v681 = vmul.f32 %v672, %v677
        %v682 = vmul.f32 %v673, %v678
        %vm683 = vcmask 588800
        %v685 = vsel %vm683, %v544, 0
        %687 = vmatpush.msra.mxu0 0.0
        %688 = vmatpush.msra.mxu0 0.0
        %689 = vmatpush.msra.mxu0 0.0
        %690 = vmatpush.msra.mxu0 0.0
        %691 = vmatpush.msra.mxu0 0.0
        %692 = vmatpush.msra.mxu0 0.0
        %693 = vmatpush.msra.mxu0 0.0
        %694 = vmatpush.msra.mxu0 %v681
        %695 = vmatpush.msra.mxu0 %v665
        %696 = vmatpush.msra.mxu0 %v649
        %697 = vmatpush.msra.mxu0 %v633
        %698 = vmatpush.msra.mxu0 %v617
        %699 = vmatpush.msra.mxu0 %v608
        %700 = vmatpush.msra.mxu0 %v592
        %701 = vmatpush.msra.mxu0 %v576
        %702 = vmatpush.msra.mxu0 %v560
        %703 = vmatmul.f32.gmra.mxu0 %v685
        %v704 = vpop.f32.mrf.mxu0
        %v705 = vadd.f32 0.0, %v704
        %706 = vdwg.mxu0
        %707 = vmatpush.msra.mxu0 0.0
        %708 = vmatpush.msra.mxu0 0.0
        %709 = vmatpush.msra.mxu0 0.0
        %710 = vmatpush.msra.mxu0 0.0
        %711 = vmatpush.msra.mxu0 0.0
        %712 = vmatpush.msra.mxu0 0.0
        %713 = vmatpush.msra.mxu0 0.0
        %714 = vmatpush.msra.mxu0 %v682
        %715 = vmatpush.msra.mxu0 %v666
        %716 = vmatpush.msra.mxu0 %v650
        %717 = vmatpush.msra.mxu0 %v634
        %718 = vmatpush.msra.mxu0 %v618
        %719 = vmatpush.msra.mxu0 %v609
        %720 = vmatpush.msra.mxu0 %v593
        %721 = vmatpush.msra.mxu0 %v577
        %722 = vmatpush.msra.mxu0 %v561
        %723 = vmatmul.f32.gmra.mxu0 %v685
        %v724 = vpop.f32.mrf.mxu0
        %v725 = vadd.f32 0.0, %v724
        %726 = vdwg.mxu0
        %v727 = vadd.f32 %v705, %v725
        %728 = vadd.xlane.f32.xlu0 %v727
        %v729 = vpop.xlane.xlu0 %728
        %v730 = vrot.slane %v729, 4
        %v731 = vadd.f32 %v729, %v730
        %v732 = vrot.slane %v731, 2
        %v733 = vadd.f32 %v731, %v732
        %v734 = vrot.slane %v733, 1
        %v735 = vadd.f32 %v733, %v734
        %s736 = vtos %v735
        %v737 = vmul.f32 %v705, %v705
        %v738 = vmul.f32 %v725, %v725
        %v739 = vadd.f32 %v737, %v738
        %740 = vadd.xlane.f32.xlu0 %v739
        %v741 = vpop.xlane.xlu0 %740
        %v742 = vrot.slane %v741, 4
        %v743 = vadd.f32 %v741, %v742
        %v744 = vrot.slane %v743, 2
        %v745 = vadd.f32 %v743, %v744
        %v746 = vrot.slane %v745, 1
        %v747 = vadd.f32 %v745, %v746
        %s748 = vtos %v747
        %v749 = vrcp.pop 2048.0
        %v750 = vmul.f32 2048.0, %v749
        %v751 = vsub.f32 1.0, %v750
        %v752 = vmul.f32 %v749, %v751
        %v753 = vadd.f32 %v749, %v752
        %vm754 = vweird.f32 %v749
        %v755 = vsel %vm754, %v749, %v753
        %s756 = vtos %v755
        %s757 = smul.f32 %s736, %s756
        %v758 = vrcp.pop 2048.0
        %v759 = vmul.f32 2048.0, %v758
        %v760 = vsub.f32 1.0, %v759
        %v761 = vmul.f32 %v758, %v760
        %v762 = vadd.f32 %v758, %v761
        %vm763 = vweird.f32 %v758
        %v764 = vsel %vm763, %v758, %v762
        %s765 = vtos %v764
        %s766 = smul.f32 %s748, %s765
        %s767 = smul.f32 %s757, %s757
        %s768 = ssub.f32 %s766, %s767
        %s769 = smax.f32 %s768, 0.0
        %v770 = vstv %s757
        %v771 = vsub.f32 %v705, %v770
        %v772 = vsub.f32 %v725, %v770
        %s773 = sadd.f32 %s769, 1e-05
        %v774 = vstv %s773
        %v775 = vrsqrt.pop %v774
        %v776 = vmul.f32 %v775, %v774
        %v777 = vmul.f32 %v776, %v775
        %v778 = vmul.f32 0.5, %v777
        %v779 = vsub.f32 1.5, %v778
        %v780 = vmul.f32 %v775, %v779
        %vm781 = vweird.f32 %v774
        %vm782 = vweird.f32 %v775
        %vm783 = vmor %vm781, %vm782
        %v784 = vsel %vm783, %v775, %v780
        %s785 = vtos %v784
        %v786 = vstv %s785
        %v787 = vmul.f32 %v771, %v786
        %v788 = vmul.f32 %v772, %v786
        %790 = vset.pattern.permute.xlu0 0
        %791 = vperm.xlu0 %790, %v543
        %v792 = vpop.permute.xlu0 %791
        %v794 = vmul.f32 %v787, %v792
        %v795 = vmul.f32 %v788, %v792
        %796 = vset.pattern.permute.xlu0 1
        %797 = vperm.xlu0 %796, %v543
        %v798 = vpop.permute.xlu0 %797
        %v800 = vadd.f32 %v794, %v798
        %v801 = vadd.f32 %v795, %v798
        %v802 = vmul.f32 %v800, 0.5
        %v803 = vmul.f32 %v801, 0.5
        %v804 = vmul.f32 %v800, 0.044715
        %v805 = vmul.f32 %v801, 0.044715
        %v806 = vmul.f32 %v804, %v800
        %v807 = vmul.f32 %v805, %v801
        %v808 = vmul.f32 %v806, %v800
        %v809 = vmul.f32 %v807, %v801
        %v810 = vadd.f32 %v800, %v808
        %v811 = vadd.f32 %v801, %v809
        %v812 = vmul.f32 %v810, 0.7978846
        %v813 = vmul.f32 %v811, 0.7978846
        %v814 = vtanh.pop %v812
        %v815 = vtanh.pop %v813
        %v816 = vadd.f32 %v814, 1.0
        %v817 = vadd.f32 %v815, 1.0
        %v818 = vmul.f32 %v802, %v816
        %v819 = vmul.f32 %v803, %v817
        %v820 = vld [vmem:[#allocation5] sm:$0xff]
        %821 = vrot.lane.b32.xlu0 %v818, 17
        %v822 = vpop.permute.xlu0 %821
        %823 = vrot.lane.b32.xlu0 %v819, 17
        %v824 = vpop.permute.xlu0 %823
        %v825 = vsel %vm551, %v822, %v824
        %v826 = vsel %vm551, %v824, %v822
        %v827 = vmul.f32 %v826, %v556
        %v828 = vmul.f32 %v825, %v557
        %829 = vrot.lane.b32.xlu0 %v818, 16
        %v830 = vpop.permute.xlu0 %829
        %831 = vrot.lane.b32.xlu0 %v819, 16
        %v832 = vpop.permute.xlu0 %831
        %v833 = vsel %vm566, %v830, %v832
        %v834 = vsel %vm566, %v832, %v830
        %v835 = vmul.f32 %v834, %v572
        %v836 = vmul.f32 %v833, %v573
        %837 = vrot.lane.b32.xlu0 %v818, 15
        %v838 = vpop.permute.xlu0 %837
        %839 = vrot.lane.b32.xlu0 %v819, 15
        %v840 = vpop.permute.xlu0 %839
        %v841 = vsel %vm582, %v838, %v840
        %v842 = vsel %vm582, %v840, %v838
        %v843 = vmul.f32 %v842, %v588
        %v844 = vmul.f32 %v841, %v589
        %845 = vrot.lane.b32.xlu0 %v818, 1
        %v846 = vpop.permute.xlu0 %845
        %847 = vrot.lane.b32.xlu0 %v819, 1
        %v848 = vpop.permute.xlu0 %847
        %v849 = vsel %vm598, %v846, %v848
        %v850 = vsel %vm598, %v848, %v846
        %v851 = vmul.f32 %v850, %v604
        %v852 = vmul.f32 %v849, %v605
        %v853 = vmul.f32 %v818, %v613
        %v854 = vmul.f32 %v819, %v614
        %855 = vrot.lane.b32.xlu0 %v818, 127
        %v856 = vpop.permute.xlu0 %855
        %857 = vrot.lane.b32.xlu0 %v819, 127
        %v858 = vpop.permute.xlu0 %857
        %v859 = vsel %vm623, %v856, %v858
        %v860 = vsel %vm623, %v858, %v856
        %v861 = vmul.f32 %v859, %v629
        %v862 = vmul.f32 %v860, %v630
        %863 = vrot.lane.b32.xlu0 %v818, 113
        %v864 = vpop.permute.xlu0 %863
        %865 = vrot.lane.b32.xlu0 %v819, 113
        %v866 = vpop.permute.xlu0 %865
        %v867 = vsel %vm639, %v864, %v866
        %v868 = vsel %vm639, %v866, %v864
        %v869 = vmul.f32 %v867, %v645
        %v870 = vmul.f32 %v868, %v646
        %871 = vrot.lane.b32.xlu0 %v818, 112
        %v872 = vpop.permute.xlu0 %871
        %873 = vrot.lane.b32.xlu0 %v819, 112
        %v874 = vpop.permute.xlu0 %873
        %v875 = vsel %vm655, %v872, %v874
        %v876 = vsel %vm655, %v874, %v872
        %v877 = vmul.f32 %v875, %v661
        %v878 = vmul.f32 %v876, %v662
        %879 = vrot.lane.b32.xlu0 %v818, 111
        %v880 = vpop.permute.xlu0 %879
        %881 = vrot.lane.b32.xlu0 %v819, 111
        %v882 = vpop.permute.xlu0 %881
        %v883 = vsel %vm671, %v880, %v882
        %v884 = vsel %vm671, %v882, %v880
        %v885 = vmul.f32 %v883, %v677
        %v886 = vmul.f32 %v884, %v678
        %v888 = vsel %vm683, %v820, 0
        %890 = vmatpush.msra.mxu0 0.0
        %891 = vmatpush.msra.mxu0 0.0
        %892 = vmatpush.msra.mxu0 0.0
        %893 = vmatpush.msra.mxu0 0.0
        %894 = vmatpush.msra.mxu0 0.0
        %895 = vmatpush.msra.mxu0 0.0
        %896 = vmatpush.msra.mxu0 0.0
        %897 = vmatpush.msra.mxu0 %v885
        %898 = vmatpush.msra.mxu0 %v877
        %899 = vmatpush.msra.mxu0 %v869
        %900 = vmatpush.msra.mxu0 %v861
        %901 = vmatpush.msra.mxu0 %v853
        %902 = vmatpush.msra.mxu0 %v851
        %903 = vmatpush.msra.mxu0 %v843
        %904 = vmatpush.msra.mxu0 %v835
        %905 = vmatpush.msra.mxu0 %v827
        %906 = vmatmul.f32.gmra.mxu0 %v888
        %v907 = vpop.f32.mrf.mxu0
        %v908 = vadd.f32 0.0, %v907
        %909 = vdwg.mxu0
        %910 = vmatpush.msra.mxu0 0.0
        %911 = vmatpush.msra.mxu0 0.0
        %912 = vmatpush.msra.mxu0 0.0
        %913 = vmatpush.msra.mxu0 0.0
        %914 = vmatpush.msra.mxu0 0.0
        %915 = vmatpush.msra.mxu0 0.0
        %916 = vmatpush.msra.mxu0 0.0
        %917 = vmatpush.msra.mxu0 %v886
        %918 = vmatpush.msra.mxu0 %v878
        %919 = vmatpush.msra.mxu0 %v870
        %920 = vmatpush.msra.mxu0 %v862
        %921 = vmatpush.msra.mxu0 %v854
        %922 = vmatpush.msra.mxu0 %v852
        %923 = vmatpush.msra.mxu0 %v844
        %924 = vmatpush.msra.mxu0 %v836
        %925 = vmatpush.msra.mxu0 %v828
        %926 = vmatmul.f32.gmra.mxu0 %v888
        %v927 = vpop.f32.mrf.mxu0
        %v928 = vadd.f32 0.0, %v927
        %929 = vdwg.mxu0
        %v930 = vadd.f32 %v908, %v928
        %931 = vadd.xlane.f32.xlu0 %v930
        %v932 = vpop.xlane.xlu0 %931
        %v933 = vrot.slane %v932, 4
        %v934 = vadd.f32 %v932, %v933
        %v935 = vrot.slane %v934, 2
        %v936 = vadd.f32 %v934, %v935
        %v937 = vrot.slane %v936, 1
        %v938 = vadd.f32 %v936, %v937
        %s939 = vtos %v938
        %v940 = vmul.f32 %v908, %v908
        %v941 = vmul.f32 %v928, %v928
        %v942 = vadd.f32 %v940, %v941
        %943 = vadd.xlane.f32.xlu0 %v942
        %v944 = vpop.xlane.xlu0 %943
        %v945 = vrot.slane %v944, 4
        %v946 = vadd.f32 %v944, %v945
        %v947 = vrot.slane %v946, 2
        %v948 = vadd.f32 %v946, %v947
        %v949 = vrot.slane %v948, 1
        %v950 = vadd.f32 %v948, %v949
        %s951 = vtos %v950
        %v952 = vrcp.pop 2048.0
        %v953 = vmul.f32 2048.0, %v952
        %v954 = vsub.f32 1.0, %v953
        %v955 = vmul.f32 %v952, %v954
        %v956 = vadd.f32 %v952, %v955
        %vm957 = vweird.f32 %v952
        %v958 = vsel %vm957, %v952, %v956
        %s959 = vtos %v958
        %s960 = smul.f32 %s939, %s959
        %v961 = vrcp.pop 2048.0
        %v962 = vmul.f32 2048.0, %v961
        %v963 = vsub.f32 1.0, %v962
        %v964 = vmul.f32 %v961, %v963
        %v965 = vadd.f32 %v961, %v964
        %vm966 = vweird.f32 %v961
        %v967 = vsel %vm966, %v961, %v965
        %s968 = vtos %v967
        %s969 = smul.f32 %s951, %s968
        %s970 = smul.f32 %s960, %s960
        %s971 = ssub.f32 %s969, %s970
        %s972 = smax.f32 %s971, 0.0
        %v973 = vstv %s960
        %v974 = vsub.f32 %v908, %v973
        %v975 = vsub.f32 %v928, %v973
        %s976 = sadd.f32 %s972, 1e-05
        %v977 = vstv %s976
        %v978 = vrsqrt.pop %v977
        %v979 = vmul.f32 %v978, %v977
        %v980 = vmul.f32 %v979, %v978
        %v981 = vmul.f32 0.5, %v980
        %v982 = vsub.f32 1.5, %v981
        %v983 = vmul.f32 %v978, %v982
        %vm984 = vweird.f32 %v977
        %vm985 = vweird.f32 %v978
        %vm986 = vmor %vm984, %vm985
        %v987 = vsel %vm986, %v978, %v983
        %s988 = vtos %v987
        %v989 = vstv %s988
        %v990 = vmul.f32 %v974, %v989
        %v991 = vmul.f32 %v975, %v989
        %992 = vset.pattern.permute.xlu0 2
        %993 = vperm.xlu0 %992, %v543
        %v994 = vpop.permute.xlu0 %993
        %v996 = vmul.f32 %v990, %v994
        %v997 = vmul.f32 %v991, %v994
        %998 = vset.pattern.permute.xlu0 3
        %999 = vperm.xlu0 %998, %v543
        %v1000 = vpop.permute.xlu0 %999
        %v1002 = vadd.f32 %v996, %v1000
        %v1003 = vadd.f32 %v997, %v1000
        %v1004 = vadd.f32 %v541, %v1002
        %v1005 = vadd.f32 %v542, %v1003
        %v1006 = vmul.f32 %v1004, 0.5
        %v1007 = vmul.f32 %v1005, 0.5
        %v1008 = vmul.f32 %v1004, 0.044715
        %v1009 = vmul.f32 %v1005, 0.044715
        %v1010 = vmul.f32 %v1008, %v1004
        %v1011 = vmul.f32 %v1009, %v1005
        %v1012 = vmul.f32 %v1010, %v1004
        %v1013 = vmul.f32 %v1011, %v1005
        %v1014 = vadd.f32 %v1004, %v1012
        %v1015 = vadd.f32 %v1005, %v1013
        %v1016 = vmul.f32 %v1014, 0.7978846
        %v1017 = vmul.f32 %v1015, 0.7978846
        %v1018 = vtanh.pop %v1016
        %v1019 = vtanh.pop %v1017
        %v1020 = vadd.f32 %v1018, 1.0
        %v1021 = vadd.f32 %v1019, 1.0
        %v1022 = vmul.f32 %v1006, %v1020
        %v1023 = vmul.f32 %v1007, %v1021
        %v1024 = vld [vmem:[%s8] sm:$0xf]
        %v1025 = vld [vmem:[#allocation7] sm:$0xf]
        %1026 = vrot.lane.b32.xlu0 %v1022, 17
        %v1027 = vpop.permute.xlu0 %1026
        %1028 = vrot.lane.b32.xlu0 %v1023, 17
        %v1029 = vpop.permute.xlu0 %1028
        %v1030 = vsel %vm551, %v1027, %v1029
        %v1031 = vsel %vm551, %v1029, %v1027
        %v1032 = vmul.f32 %v1031, %v556
        %v1033 = vmul.f32 %v1030, %v557
        %1034 = vrot.lane.b32.xlu0 %v1022, 16
        %v1035 = vpop.permute.xlu0 %1034
        %1036 = vrot.lane.b32.xlu0 %v1023, 16
        %v1037 = vpop.permute.xlu0 %1036
        %v1038 = vsel %vm566, %v1035, %v1037
        %v1039 = vsel %vm566, %v1037, %v1035
        %v1040 = vmul.f32 %v1039, %v572
        %v1041 = vmul.f32 %v1038, %v573
        %1042 = vrot.lane.b32.xlu0 %v1022, 15
        %v1043 = vpop.permute.xlu0 %1042
        %1044 = vrot.lane.b32.xlu0 %v1023, 15
        %v1045 = vpop.permute.xlu0 %1044
        %v1046 = vsel %vm582, %v1043, %v1045
        %v1047 = vsel %vm582, %v1045, %v1043
        %v1048 = vmul.f32 %v1047, %v588
        %v1049 = vmul.f32 %v1046, %v589
        %1050 = vrot.lane.b32.xlu0 %v1022, 1
        %v1051 = vpop.permute.xlu0 %1050
        %1052 = vrot.lane.b32.xlu0 %v1023, 1
        %v1053 = vpop.permute.xlu0 %1052
        %v1054 = vsel %vm598, %v1051, %v1053
        %v1055 = vsel %vm598, %v1053, %v1051
        %v1056 = vmul.f32 %v1055, %v604
        %v1057 = vmul.f32 %v1054, %v605
        %v1058 = vmul.f32 %v1022, %v613
        %v1059 = vmul.f32 %v1023, %v614
        %1060 = vrot.lane.b32.xlu0 %v1022, 127
        %v1061 = vpop.permute.xlu0 %1060
        %1062 = vrot.lane.b32.xlu0 %v1023, 127
        %v1063 = vpop.permute.xlu0 %1062
        %v1064 = vsel %vm623, %v1061, %v1063
        %v1065 = vsel %vm623, %v1063, %v1061
        %v1066 = vmul.f32 %v1064, %v629
        %v1067 = vmul.f32 %v1065, %v630
        %1068 = vrot.lane.b32.xlu0 %v1022, 113
        %v1069 = vpop.permute.xlu0 %1068
        %1070 = vrot.lane.b32.xlu0 %v1023, 113
        %v1071 = vpop.permute.xlu0 %1070
        %v1072 = vsel %vm639, %v1069, %v1071
        %v1073 = vsel %vm639, %v1071, %v1069
        %v1074 = vmul.f32 %v1072, %v645
        %v1075 = vmul.f32 %v1073, %v646
        %1076 = vrot.lane.b32.xlu0 %v1022, 112
        %v1077 = vpop.permute.xlu0 %1076
        %1078 = vrot.lane.b32.xlu0 %v1023, 112
        %v1079 = vpop.permute.xlu0 %1078
        %v1080 = vsel %vm655, %v1077, %v1079
        %v1081 = vsel %vm655, %v1079, %v1077
        %v1082 = vmul.f32 %v1080, %v661
        %v1083 = vmul.f32 %v1081, %v662
        %1084 = vrot.lane.b32.xlu0 %v1022, 111
        %v1085 = vpop.permute.xlu0 %1084
        %1086 = vrot.lane.b32.xlu0 %v1023, 111
        %v1087 = vpop.permute.xlu0 %1086
        %v1088 = vsel %vm671, %v1085, %v1087
        %v1089 = vsel %vm671, %v1087, %v1085
        %v1090 = vmul.f32 %v1088, %v677
        %v1091 = vmul.f32 %v1089, %v678
        %v1093 = vsel %vm683, %v1025, 0
        %1095 = vmatpush.msra.mxu0 0.0
        %1096 = vmatpush.msra.mxu0 0.0
        %1097 = vmatpush.msra.mxu0 0.0
        %1098 = vmatpush.msra.mxu0 0.0
        %1099 = vmatpush.msra.mxu0 0.0
        %1100 = vmatpush.msra.mxu0 0.0
        %1101 = vmatpush.msra.mxu0 0.0
        %1102 = vmatpush.msra.mxu0 %v1090
        %1103 = vmatpush.msra.mxu0 %v1082
        %1104 = vmatpush.msra.mxu0 %v1074
        %1105 = vmatpush.msra.mxu0 %v1066
        %1106 = vmatpush.msra.mxu0 %v1058
        %1107 = vmatpush.msra.mxu0 %v1056
        %1108 = vmatpush.msra.mxu0 %v1048
        %1109 = vmatpush.msra.mxu0 %v1040
        %1110 = vmatpush.msra.mxu0 %v1032
        %1111 = vmatmul.f32.gmra.mxu0 %v1093
        %v1112 = vpop.f32.mrf.mxu0
        %v1113 = vadd.f32 0.0, %v1112
        %1114 = vdwg.mxu0
        %1115 = vmatpush.msra.mxu0 0.0
        %1116 = vmatpush.msra.mxu0 0.0
        %1117 = vmatpush.msra.mxu0 0.0
        %1118 = vmatpush.msra.mxu0 0.0
        %1119 = vmatpush.msra.mxu0 0.0
        %1120 = vmatpush.msra.mxu0 0.0
        %1121 = vmatpush.msra.mxu0 0.0
        %1122 = vmatpush.msra.mxu0 %v1091
        %1123 = vmatpush.msra.mxu0 %v1083
        %1124 = vmatpush.msra.mxu0 %v1075
        %1125 = vmatpush.msra.mxu0 %v1067
        %1126 = vmatpush.msra.mxu0 %v1059
        %1127 = vmatpush.msra.mxu0 %v1057
        %1128 = vmatpush.msra.mxu0 %v1049
        %1129 = vmatpush.msra.mxu0 %v1041
        %1130 = vmatpush.msra.mxu0 %v1033
        %1131 = vmatmul.f32.gmra.mxu0 %v1093
        %v1132 = vpop.f32.mrf.mxu0
        %v1133 = vadd.f32 0.0, %v1132
        %1134 = vdwg.mxu0
        %vm1135 = vcmask 1043456
        %v1136 = vsel %vm1135, %v1113, 0.0
        %v1137 = vsel %vm1135, %v1133, 0.0
        %v1138 = vadd.f32 %v1136, %v1137
        %1139 = vadd.xlane.f32.xlu0 %v1138
        %v1140 = vpop.xlane.xlu0 %1139
        %v1141 = vrot.slane %v1140, 4
        %v1142 = vadd.f32 %v1140, %v1141
        %v1143 = vrot.slane %v1142, 2
        %v1144 = vadd.f32 %v1142, %v1143
        %v1145 = vrot.slane %v1144, 1
        %v1146 = vadd.f32 %v1144, %v1145
        %s1147 = vtos %v1146
        %v1148 = vmul.f32 %v1113, %v1113
        %v1149 = vmul.f32 %v1133, %v1133
        %v1150 = vsel %vm1135, %v1148, 0.0
        %v1151 = vsel %vm1135, %v1149, 0.0
        %v1152 = vadd.f32 %v1150, %v1151
        %1153 = vadd.xlane.f32.xlu0 %v1152
        %v1154 = vpop.xlane.xlu0 %1153
        %v1155 = vrot.slane %v1154, 4
        %v1156 = vadd.f32 %v1154, %v1155
        %v1157 = vrot.slane %v1156, 2
        %v1158 = vadd.f32 %v1156, %v1157
        %v1159 = vrot.slane %v1158, 1
        %v1160 = vadd.f32 %v1158, %v1159
        %s1161 = vtos %v1160
        %v1162 = vrcp.pop 1024.0
        %v1163 = vmul.f32 1024.0, %v1162
        %v1164 = vsub.f32 1.0, %v1163
        %v1165 = vmul.f32 %v1162, %v1164
        %v1166 = vadd.f32 %v1162, %v1165
        %vm1167 = vweird.f32 %v1162
        %v1168 = vsel %vm1167, %v1162, %v1166
        %s1169 = vtos %v1168
        %s1170 = smul.f32 %s1147, %s1169
        %v1171 = vrcp.pop 1024.0
        %v1172 = vmul.f32 1024.0, %v1171
        %v1173 = vsub.f32 1.0, %v1172
        %v1174 = vmul.f32 %v1171, %v1173
        %v1175 = vadd.f32 %v1171, %v1174
        %vm1176 = vweird.f32 %v1171
        %v1177 = vsel %vm1176, %v1171, %v1175
        %s1178 = vtos %v1177
        %s1179 = smul.f32 %s1161, %s1178
        %s1180 = smul.f32 %s1170, %s1170
        %s1181 = ssub.f32 %s1179, %s1180
        %s1182 = smax.f32 %s1181, 0.0
        %v1183 = vstv %s1170
        %v1184 = vsub.f32 %v1113, %v1183
        %v1185 = vsub.f32 %v1133, %v1183
        %s1186 = sadd.f32 %s1182, 1e-05
        %v1187 = vstv %s1186
        %v1188 = vrsqrt.pop %v1187
        %v1189 = vmul.f32 %v1188, %v1187
        %v1190 = vmul.f32 %v1189, %v1188
        %v1191 = vmul.f32 0.5, %v1190
        %v1192 = vsub.f32 1.5, %v1191
        %v1193 = vmul.f32 %v1188, %v1192
        %vm1194 = vweird.f32 %v1187
        %vm1195 = vweird.f32 %v1188
        %vm1196 = vmor %vm1194, %vm1195
        %v1197 = vsel %vm1196, %v1188, %v1193
        %s1198 = vtos %v1197
        %v1199 = vstv %s1198
        %v1200 = vmul.f32 %v1184, %v1199
        %v1201 = vmul.f32 %v1185, %v1199
        %1203 = vset.pattern.permute.xlu0 4
        %1204 = vperm.xlu0 %1203, %v1024
        %v1205 = vpop.permute.xlu0 %1204
        %v1207 = vmul.f32 %v1200, %v1205
        %v1208 = vmul.f32 %v1201, %v1205
        %1209 = vset.pattern.permute.xlu0 5
        %1210 = vperm.xlu0 %1209, %v1024
        %v1211 = vpop.permute.xlu0 %1210
        %v1213 = vadd.f32 %v1207, %v1211
        %v1214 = vadd.f32 %v1208, %v1211
        %v1215 = vmul.f32 %v1213, 0.5
        %v1216 = vmul.f32 %v1214, 0.5
        %v1217 = vmul.f32 %v1213, 0.044715
        %v1218 = vmul.f32 %v1214, 0.044715
        %v1219 = vmul.f32 %v1217, %v1213
        %v1220 = vmul.f32 %v1218, %v1214
        %v1221 = vmul.f32 %v1219, %v1213
        %v1222 = vmul.f32 %v1220, %v1214
        %v1223 = vadd.f32 %v1213, %v1221
        %v1224 = vadd.f32 %v1214, %v1222
        %v1225 = vmul.f32 %v1223, 0.7978846
        %v1226 = vmul.f32 %v1224, 0.7978846
        %v1227 = vtanh.pop %v1225
        %v1228 = vtanh.pop %v1226
        %v1229 = vadd.f32 %v1227, 1.0
        %v1230 = vadd.f32 %v1228, 1.0
        %v1231 = vmul.f32 %v1215, %v1229
        %v1232 = vmul.f32 %v1216, %v1230
        %v1233 = vld [vmem:[%s8] sm:$0xff]
        %v1234 = vld [vmem:[%s8 + $0x8] sm:$0x1]
        %v1235 = vld [vmem:[%s7] sm:$0xff]
        %v1236 = vld [vmem:[%s7 + $0x8] sm:$0x1]
        %1237 = vrot.lane.b32.xlu0 %v1231, 17
        %v1238 = vpop.permute.xlu0 %1237
        %1239 = vrot.lane.b32.xlu0 %v1232, 17
        %v1240 = vpop.permute.xlu0 %1239
        %v1241 = vsel %vm551, %v1238, %v1240
        %v1242 = vsel %vm551, %v1240, %v1238
        %v1243 = vmul.f32 %v1242, %v556
        %v1244 = vmul.f32 %v1241, %v557
        %1245 = vrot.lane.b32.xlu0 %v1231, 16
        %v1246 = vpop.permute.xlu0 %1245
        %1247 = vrot.lane.b32.xlu0 %v1232, 16
        %v1248 = vpop.permute.xlu0 %1247
        %v1249 = vsel %vm566, %v1246, %v1248
        %v1250 = vsel %vm566, %v1248, %v1246
        %v1251 = vmul.f32 %v1250, %v572
        %v1252 = vmul.f32 %v1249, %v573
        %1253 = vrot.lane.b32.xlu0 %v1231, 15
        %v1254 = vpop.permute.xlu0 %1253
        %1255 = vrot.lane.b32.xlu0 %v1232, 15
        %v1256 = vpop.permute.xlu0 %1255
        %v1257 = vsel %vm582, %v1254, %v1256
        %v1258 = vsel %vm582, %v1256, %v1254
        %v1259 = vmul.f32 %v1258, %v588
        %v1260 = vmul.f32 %v1257, %v589
        %1261 = vrot.lane.b32.xlu0 %v1231, 1
        %v1262 = vpop.permute.xlu0 %1261
        %1263 = vrot.lane.b32.xlu0 %v1232, 1
        %v1264 = vpop.permute.xlu0 %1263
        %v1265 = vsel %vm598, %v1262, %v1264
        %v1266 = vsel %vm598, %v1264, %v1262
        %v1267 = vmul.f32 %v1266, %v604
        %v1268 = vmul.f32 %v1265, %v605
        %v1269 = vmul.f32 %v1231, %v613
        %v1270 = vmul.f32 %v1232, %v614
        %1271 = vrot.lane.b32.xlu0 %v1231, 127
        %v1272 = vpop.permute.xlu0 %1271
        %1273 = vrot.lane.b32.xlu0 %v1232, 127
        %v1274 = vpop.permute.xlu0 %1273
        %v1275 = vsel %vm623, %v1272, %v1274
        %v1276 = vsel %vm623, %v1274, %v1272
        %v1277 = vmul.f32 %v1275, %v629
        %v1278 = vmul.f32 %v1276, %v630
        %1279 = vrot.lane.b32.xlu0 %v1231, 113
        %v1280 = vpop.permute.xlu0 %1279
        %1281 = vrot.lane.b32.xlu0 %v1232, 113
        %v1282 = vpop.permute.xlu0 %1281
        %v1283 = vsel %vm639, %v1280, %v1282
        %v1284 = vsel %vm639, %v1282, %v1280
        %v1285 = vmul.f32 %v1283, %v645
        %v1286 = vmul.f32 %v1284, %v646
        %1287 = vrot.lane.b32.xlu0 %v1231, 112
        %v1288 = vpop.permute.xlu0 %1287
        %1289 = vrot.lane.b32.xlu0 %v1232, 112
        %v1290 = vpop.permute.xlu0 %1289
        %v1291 = vsel %vm655, %v1288, %v1290
        %v1292 = vsel %vm655, %v1290, %v1288
        %v1293 = vmul.f32 %v1291, %v661
        %v1294 = vmul.f32 %v1292, %v662
        %1295 = vrot.lane.b32.xlu0 %v1231, 111
        %v1296 = vpop.permute.xlu0 %1295
        %1297 = vrot.lane.b32.xlu0 %v1232, 111
        %v1298 = vpop.permute.xlu0 %1297
        %v1299 = vsel %vm671, %v1296, %v1298
        %v1300 = vsel %vm671, %v1298, %v1296
        %v1301 = vmul.f32 %v1299, %v677
        %v1302 = vmul.f32 %v1300, %v678
        %v1305 = vrot.slane %v1251, 4
        %v1306 = vrot.slane %v1252, 4
        %v1311 = vrot.slane %v1267, 4
        %v1312 = vrot.slane %v1268, 4
        %v1317 = vrot.slane %v1277, 4
        %v1318 = vrot.slane %v1278, 4
        %v1323 = vrot.slane %v1293, 4
        %v1324 = vrot.slane %v1294, 4
        %v1327 = vsel %vm1135, %v1243, %v1305
        %v1328 = vsel %vm1135, %v1244, %v1306
        %v1329 = vsel %vm1135, %v1259, %v1311
        %v1330 = vsel %vm1135, %v1260, %v1312
        %v1331 = vsel %vm1135, %v1269, %v1317
        %v1332 = vsel %vm1135, %v1270, %v1318
        %v1333 = vsel %vm1135, %v1285, %v1323
        %v1334 = vsel %vm1135, %v1286, %v1324
        %vm1335 = vcmask 293888
        %v1337 = vsel %vm1335, %v1235, 0
        %v1340 = vsel %vm1335, %v1236, 0
        %v1343 = vsel %vm1135, %v1301, 0
        %v1346 = vsel %vm1135, %v1302, 0
        %1348 = vmatpush.msra.mxu0 0.0
        %1349 = vmatpush.msra.mxu0 0.0
        %1350 = vmatpush.msra.mxu0 0.0
        %1351 = vmatpush.msra.mxu0 0.0
        %1352 = vmatpush.msra.mxu0 0.0
        %1353 = vmatpush.msra.mxu0 0.0
        %1354 = vmatpush.msra.mxu0 0.0
        %1355 = vmatpush.msra.mxu0 0.0
        %1356 = vmatpush.msra.mxu0 0.0
        %1357 = vmatpush.msra.mxu0 0.0
        %1358 = vmatpush.msra.mxu0 0.0
        %1359 = vmatpush.msra.mxu0 %v1343
        %1360 = vmatpush.msra.mxu0 %v1333
        %1361 = vmatpush.msra.mxu0 %v1331
        %1362 = vmatpush.msra.mxu0 %v1329
        %1363 = vmatpush.msra.mxu0 %v1327
        %1364 = vmatmul.f32.gmra.mxu0 %v1337
        %v1365 = vpop.f32.mrf.mxu0
        %v1366 = vadd.f32 0.0, %v1365
        %1367 = vmatmul.f32.gmra.mxu0 %v1340
        %v1368 = vpop.f32.mrf.mxu0
        %v1369 = vadd.f32 0.0, %v1368
        %1370 = vdwg.mxu0
        %1371 = vmatpush.msra.mxu0 0.0
        %1372 = vmatpush.msra.mxu0 0.0
        %1373 = vmatpush.msra.mxu0 0.0
        %1374 = vmatpush.msra.mxu0 0.0
        %1375 = vmatpush.msra.mxu0 0.0
        %1376 = vmatpush.msra.mxu0 0.0
        %1377 = vmatpush.msra.mxu0 0.0
        %1378 = vmatpush.msra.mxu0 0.0
        %1379 = vmatpush.msra.mxu0 0.0
        %1380 = vmatpush.msra.mxu0 0.0
        %1381 = vmatpush.msra.mxu0 0.0
        %1382 = vmatpush.msra.mxu0 %v1346
        %1383 = vmatpush.msra.mxu0 %v1334
        %1384 = vmatpush.msra.mxu0 %v1332
        %1385 = vmatpush.msra.mxu0 %v1330
        %1386 = vmatpush.msra.mxu0 %v1328
        %1387 = vmatmul.f32.gmra.mxu0 %v1337
        %v1388 = vpop.f32.mrf.mxu0
        %v1389 = vadd.f32 0.0, %v1388
        %1390 = vmatmul.f32.gmra.mxu0 %v1340
        %v1391 = vpop.f32.mrf.mxu0
        %v1392 = vadd.f32 0.0, %v1391
        %1393 = vdwg.mxu0
        %v1394 = vadd.f32 %v1366, %v1389
        %vm1395 = vcmask 1040384
        %v1396 = vsel %vm1395, %v1369, 0.0
        %v1397 = vadd.f32 %v1394, %v1396
        %v1398 = vsel %vm1395, %v1392, 0.0
        %v1399 = vadd.f32 %v1397, %v1398
        %1400 = vadd.xlane.f32.xlu0 %v1399
        %v1401 = vpop.xlane.xlu0 %1400
        %v1402 = vrot.slane %v1401, 4
        %v1403 = vadd.f32 %v1401, %v1402
        %v1404 = vrot.slane %v1403, 2
        %v1405 = vadd.f32 %v1403, %v1404
        %v1406 = vrot.slane %v1405, 1
        %v1407 = vadd.f32 %v1405, %v1406
        %s1408 = vtos %v1407
        %v1409 = vmul.f32 %v1366, %v1366
        %v1410 = vmul.f32 %v1389, %v1389
        %v1411 = vmul.f32 %v1369, %v1369
        %v1412 = vmul.f32 %v1392, %v1392
        %v1413 = vadd.f32 %v1409, %v1410
        %v1414 = vsel %vm1395, %v1411, 0.0
        %v1415 = vadd.f32 %v1413, %v1414
        %v1416 = vsel %vm1395, %v1412, 0.0
        %v1417 = vadd.f32 %v1415, %v1416
        %1418 = vadd.xlane.f32.xlu0 %v1417
        %v1419 = vpop.xlane.xlu0 %1418
        %v1420 = vrot.slane %v1419, 4
        %v1421 = vadd.f32 %v1419, %v1420
        %v1422 = vrot.slane %v1421, 2
        %v1423 = vadd.f32 %v1421, %v1422
        %v1424 = vrot.slane %v1423, 1
        %v1425 = vadd.f32 %v1423, %v1424
        %s1426 = vtos %v1425
        %v1427 = vrcp.pop 2304.0
        %v1428 = vmul.f32 2304.0, %v1427
        %v1429 = vsub.f32 1.0, %v1428
        %v1430 = vmul.f32 %v1427, %v1429
        %v1431 = vadd.f32 %v1427, %v1430
        %vm1432 = vweird.f32 %v1427
        %v1433 = vsel %vm1432, %v1427, %v1431
        %s1434 = vtos %v1433
        %s1435 = smul.f32 %s1408, %s1434
        %v1436 = vrcp.pop 2304.0
        %v1437 = vmul.f32 2304.0, %v1436
        %v1438 = vsub.f32 1.0, %v1437
        %v1439 = vmul.f32 %v1436, %v1438
        %v1440 = vadd.f32 %v1436, %v1439
        %vm1441 = vweird.f32 %v1436
        %v1442 = vsel %vm1441, %v1436, %v1440
        %s1443 = vtos %v1442
        %s1444 = smul.f32 %s1426, %s1443
        %s1445 = smul.f32 %s1435, %s1435
        %s1446 = ssub.f32 %s1444, %s1445
        %s1447 = smax.f32 %s1446, 0.0
        %v1448 = vstv %s1435
        %v1449 = vsub.f32 %v1366, %v1448
        %v1450 = vsub.f32 %v1389, %v1448
        %v1451 = vsub.f32 %v1369, %v1448
        %v1452 = vsub.f32 %v1392, %v1448
        %s1453 = sadd.f32 %s1447, 1e-05
        %v1454 = vstv %s1453
        %v1455 = vrsqrt.pop %v1454
        %v1456 = vmul.f32 %v1455, %v1454
        %v1457 = vmul.f32 %v1456, %v1455
        %v1458 = vmul.f32 0.5, %v1457
        %v1459 = vsub.f32 1.5, %v1458
        %v1460 = vmul.f32 %v1455, %v1459
        %vm1461 = vweird.f32 %v1454
        %vm1462 = vweird.f32 %v1455
        %vm1463 = vmor %vm1461, %vm1462
        %v1464 = vsel %vm1463, %v1455, %v1460
        %s1465 = vtos %v1464
        %v1466 = vstv %s1465
        %v1467 = vmul.f32 %v1449, %v1466
        %v1468 = vmul.f32 %v1450, %v1466
        %v1469 = vmul.f32 %v1451, %v1466
        %v1470 = vmul.f32 %v1452, %v1466
        %1472 = vset.pattern.permute.xlu0 6
        %1473 = vperm.xlu0 %1472, %v1233
        %v1474 = vpop.permute.xlu0 %1473
        %1477 = vset.pattern.permute.xlu0 6
        %1478 = vperm.xlu0 %1477, %v1234
        %v1479 = vpop.permute.xlu0 %1478
        %v1481 = vmul.f32 %v1467, %v1474
        %v1482 = vmul.f32 %v1468, %v1474
        %v1483 = vmul.f32 %v1469, %v1479
        %v1484 = vmul.f32 %v1470, %v1479
        %1485 = vset.pattern.permute.xlu0 7
        %1486 = vperm.xlu0 %1485, %v1233
        %v1487 = vpop.permute.xlu0 %1486
        %1489 = vset.pattern.permute.xlu0 7
        %1490 = vperm.xlu0 %1489, %v1234
        %v1491 = vpop.permute.xlu0 %1490
        %v1493 = vadd.f32 %v1481, %v1487
        %v1494 = vadd.f32 %v1482, %v1487
        %v1495 = vadd.f32 %v1483, %v1491
        %v1496 = vadd.f32 %v1484, %v1491
        %v1497 = vld [vmem:[%s540] sm:$0x7f]
        %v1498 = vld [vmem:[#allocation8] sm:$0xff]
        %v1499 = vld [vmem:[#allocation8 + $0x8] sm:$0xff]
        %v1500 = vld [vmem:[#allocation8 + $0x10] sm:$0xff]
        %v1501 = vld [vmem:[#allocation8 + $0x18] sm:$0xff]
        %v1502 = vld [vmem:[#allocation8 + $0x20] sm:$0xff]
        %v1503 = vld [vmem:[#allocation8 + $0x28] sm:$0xff]
        %v1504 = vld [vmem:[#allocation8 + $0x30] sm:$0xff]
        %v1505 = vld [vmem:[#allocation8 + $0x38] sm:$0xff]
        %v1506 = vld [vmem:[#allocation8 + $0x40] sm:$0xff]
        %v1507 = vld [vmem:[#allocation8 + $0x48] sm:$0xff]
        %v1508 = vld [vmem:[#allocation8 + $0x50] sm:$0xff]
        %v1509 = vld [vmem:[#allocation8 + $0x58] sm:$0xff]
        %v1510 = vld [vmem:[#allocation8 + $0x60] sm:$0xff]
        %v1511 = vld [vmem:[#allocation8 + $0x68] sm:$0xff]
        %v1512 = vld [vmem:[#allocation8 + $0x70] sm:$0xff]
        %v1513 = vld [vmem:[#allocation8 + $0x78] sm:$0xff]
        %v1514 = vld [vmem:[#allocation8 + $0x80] sm:$0xff]
        %v1515 = vld [vmem:[#allocation8 + $0x88] sm:$0xff]
        %v1516 = vld [vmem:[#allocation8 + $0x90] sm:$0xff]
        %v1517 = vld [vmem:[#allocation8 + $0x98] sm:$0xff]
        %v1518 = vld [vmem:[#allocation8 + $0xa0] sm:$0xff]
        %v1519 = vld [vmem:[#allocation8 + $0xa8] sm:$0xff]
        %v1520 = vld [vmem:[#allocation8 + $0xb0] sm:$0xff]
        %v1521 = vld [vmem:[#allocation8 + $0xb8] sm:$0xff]
        %v1522 = vld [vmem:[#allocation8 + $0xc0] sm:$0xff]
        %v1523 = vld [vmem:[#allocation8 + $0xc8] sm:$0xff]
        %v1524 = vld [vmem:[#allocation8 + $0xd0] sm:$0xff]
        %v1525 = vld [vmem:[#allocation8 + $0xd8] sm:$0xff]
        %v1526 = vld [vmem:[#allocation10] sm:$0x7f]
        %v1527 = vld [vmem:[#allocation10 + $0x8] sm:$0x7f]
        %vm1528 = vcmask 916480
        %v1530 = vsel %vm1528, %v1497, 0
        %1532 = vmatpush.msra.mxu0 0.0
        %1533 = vmatpush.msra.mxu0 0.0
        %1534 = vmatpush.msra.mxu0 %v1524
        %1535 = vmatpush.msra.mxu0 %v1522
        %1536 = vmatpush.msra.mxu0 %v1520
        %1537 = vmatpush.msra.mxu0 %v1518
        %1538 = vmatpush.msra.mxu0 %v1516
        %1539 = vmatpush.msra.mxu0 %v1514
        %1540 = vmatpush.msra.mxu0 %v1512
        %1541 = vmatpush.msra.mxu0 %v1510
        %1542 = vmatpush.msra.mxu0 %v1508
        %1543 = vmatpush.msra.mxu0 %v1506
        %1544 = vmatpush.msra.mxu0 %v1504
        %1545 = vmatpush.msra.mxu0 %v1502
        %1546 = vmatpush.msra.mxu0 %v1500
        %1547 = vmatpush.msra.mxu0 %v1498
        %1548 = vmatmul.f32.gmra.mxu0 %v1530
        %v1549 = vpop.f32.mrf.mxu0
        %v1550 = vadd.f32 %v1526, %v1549
        %1551 = vdwg.mxu0
        %1552 = vmatpush.msra.mxu0 0.0
        %1553 = vmatpush.msra.mxu0 0.0
        %1554 = vmatpush.msra.mxu0 %v1525
        %1555 = vmatpush.msra.mxu0 %v1523
        %1556 = vmatpush.msra.mxu0 %v1521
        %1557 = vmatpush.msra.mxu0 %v1519
        %1558 = vmatpush.msra.mxu0 %v1517
        %1559 = vmatpush.msra.mxu0 %v1515
        %1560 = vmatpush.msra.mxu0 %v1513
        %1561 = vmatpush.msra.mxu0 %v1511
        %1562 = vmatpush.msra.mxu0 %v1509
        %1563 = vmatpush.msra.mxu0 %v1507
        %1564 = vmatpush.msra.mxu0 %v1505
        %1565 = vmatpush.msra.mxu0 %v1503
        %1566 = vmatpush.msra.mxu0 %v1501
        %1567 = vmatpush.msra.mxu0 %v1499
        %1568 = vmatmul.f32.gmra.mxu0 %v1530
        %v1569 = vpop.f32.mrf.mxu0
        %v1570 = vadd.f32 %v1527, %v1569
        %1571 = vdwg.mxu0
        %v1572 = vld [vmem:[%s536] sm:$0xff]
        %v1573 = vld [vmem:[%s536 + $0x8] sm:$0xff]
        %v1574 = vld [vmem:[%s536 + $0x10] sm:$0xff]
        %v1575 = vld [vmem:[%s536 + $0x18] sm:$0xff]
        %v1576 = vxor.u32 %v1572, 2147483648
        %v1577 = vxor.u32 %v1573, 2147483648
        %v1578 = vxor.u32 %v1574, 2147483648
        %v1579 = vxor.u32 %v1575, 2147483648
        %v1580 = vmul.f32 %v1576, 1.442695
        %v1581 = vpow.pop %v1580
        %v1582 = vmul.f32 %v1577, 1.442695
        %v1583 = vpow.pop %v1582
        %v1584 = vmul.f32 %v1578, 1.442695
        %v1585 = vpow.pop %v1584
        %v1586 = vmul.f32 %v1579, 1.442695
        %v1587 = vpow.pop %v1586
        %v1588 = vadd.f32 %v1581, 1.0
        %v1589 = vadd.f32 %v1583, 1.0
        %v1590 = vadd.f32 %v1585, 1.0
        %v1591 = vadd.f32 %v1587, 1.0
        %v1592 = vrcp.pop %v1588
        %v1593 = vmul.f32 %v1588, %v1592
        %v1594 = vsub.f32 1.0, %v1593
        %v1595 = vmul.f32 %v1592, %v1594
        %v1596 = vadd.f32 %v1592, %v1595
        %vm1597 = vweird.f32 %v1588
        %vm1598 = vweird.f32 %v1592
        %vm1599 = vmor %vm1597, %vm1598
        %v1600 = vsel %vm1599, %v1592, %v1596
        %v1601 = vand.u32 2147483647, %v1588
        %vm1602 = vcmp.eq.f32.partialorder %v1601, 8.507059e+37
        %v1603 = vand.u32 %v1588, 2147483648
        %v1604 = vor.u32 1.1754944e-38, %v1603
        %v1605 = vsel %vm1602, %v1604, %v1600
        %v1606 = vmul.f32 1.0, %v1605
        %v1607 = vrcp.pop %v1589
        %v1608 = vmul.f32 %v1589, %v1607
        %v1609 = vsub.f32 1.0, %v1608
        %v1610 = vmul.f32 %v1607, %v1609
        %v1611 = vadd.f32 %v1607, %v1610
        %vm1612 = vweird.f32 %v1589
        %vm1613 = vweird.f32 %v1607
        %vm1614 = vmor %vm1612, %vm1613
        %v1615 = vsel %vm1614, %v1607, %v1611
        %v1616 = vand.u32 2147483647, %v1589
        %vm1617 = vcmp.eq.f32.partialorder %v1616, 8.507059e+37
        %v1618 = vand.u32 %v1589, 2147483648
        %v1619 = vor.u32 1.1754944e-38, %v1618
        %v1620 = vsel %vm1617, %v1619, %v1615
        %v1621 = vmul.f32 1.0, %v1620
        %v1622 = vrcp.pop %v1590
        %v1623 = vmul.f32 %v1590, %v1622
        %v1624 = vsub.f32 1.0, %v1623
        %v1625 = vmul.f32 %v1622, %v1624
        %v1626 = vadd.f32 %v1622, %v1625
        %vm1627 = vweird.f32 %v1590
        %vm1628 = vweird.f32 %v1622
        %vm1629 = vmor %vm1627, %vm1628
        %v1630 = vsel %vm1629, %v1622, %v1626
        %v1631 = vand.u32 2147483647, %v1590
        %vm1632 = vcmp.eq.f32.partialorder %v1631, 8.507059e+37
        %v1633 = vand.u32 %v1590, 2147483648
        %v1634 = vor.u32 1.1754944e-38, %v1633
        %v1635 = vsel %vm1632, %v1634, %v1630
        %v1636 = vmul.f32 1.0, %v1635
        %v1637 = vrcp.pop %v1591
        %v1638 = vmul.f32 %v1591, %v1637
        %v1639 = vsub.f32 1.0, %v1638
        %v1640 = vmul.f32 %v1637, %v1639
        %v1641 = vadd.f32 %v1637, %v1640
        %vm1642 = vweird.f32 %v1591
        %vm1643 = vweird.f32 %v1637
        %vm1644 = vmor %vm1642, %vm1643
        %v1645 = vsel %vm1644, %v1637, %v1641
        %v1646 = vand.u32 2147483647, %v1591
        %vm1647 = vcmp.eq.f32.partialorder %v1646, 8.507059e+37
        %v1648 = vand.u32 %v1591, 2147483648
        %v1649 = vor.u32 1.1754944e-38, %v1648
        %v1650 = vsel %vm1647, %v1649, %v1645
        %v1651 = vmul.f32 1.0, %v1650
        %v1652 = vmul.f32 %v1572, %v1606
        %v1653 = vmul.f32 %v1573, %v1621
        %v1654 = vmul.f32 %v1574, %v1636
        %v1655 = vmul.f32 %v1575, %v1651
        %v1656 = vld [vmem:[#allocation11] sm:$0xff]
        %v1657 = vld [vmem:[#allocation11 + $0x8] sm:$0xff]
        %v1658 = vld [vmem:[%s8] sm:$0xff]
        %v1659 = vld [vmem:[%s8 + $0x8] sm:$0xff]
        %1662 = vrot.lane.b32.xlu0 %v1658, 120
        %v1663 = vpop.permute.xlu0 %1662
        %1664 = vrot.lane.b32.xlu0 %v1659, 120
        %v1665 = vpop.permute.xlu0 %1664
        %vm1668 = vcmask 261120
        %v1670 = vsel %vm1668, %v1656, 0
        %v1673 = vsel %vm1668, %v1657, 0
        %1675 = vmatpush.msra.mxu0 0.0
        %1676 = vmatpush.msra.mxu0 0.0
        %1677 = vmatpush.msra.mxu0 0.0
        %1678 = vmatpush.msra.mxu0 0.0
        %1679 = vmatpush.msra.mxu0 0.0
        %1680 = vmatpush.msra.mxu0 0.0
        %1681 = vmatpush.msra.mxu0 0.0
        %1682 = vmatpush.msra.mxu0 0.0
        %1683 = vmatpush.msra.mxu0 0.0
        %1684 = vmatpush.msra.mxu0 0.0
        %1685 = vmatpush.msra.mxu0 0.0
        %1686 = vmatpush.msra.mxu0 0.0
        %1687 = vmatpush.msra.mxu0 %v1655
        %1688 = vmatpush.msra.mxu0 %v1654
        %1689 = vmatpush.msra.mxu0 %v1653
        %1690 = vmatpush.msra.mxu0 %v1652
        %1691 = vmatmul.f32.gmra.mxu0 %v1670
        %v1692 = vpop.f32.mrf.mxu0
        %v1693 = vadd.f32 %v1663, %v1692
        %1694 = vmatmul.f32.gmra.mxu0 %v1673
        %v1695 = vpop.f32.mrf.mxu0
        %v1696 = vadd.f32 %v1665, %v1695
        %1697 = vdwg.mxu0
        %v1700 = vrot.slane %v1550, 7
        %v1701 = vrot.slane %v1570, 7
        %v1704 = vsel %vm1395, %v1495, %v1700
        %v1705 = vsel %vm1395, %v1496, %v1701
        %1707 = vset.pattern.permute.xlu0 0
        %1708 = vperm.xlu0 %1707, %v1693
        %v1709 = vpop.permute.xlu0 %1708
        %1712 = vset.pattern.permute.xlu0 0
        %1713 = vperm.xlu0 %1712, %v1696
        %v1714 = vpop.permute.xlu0 %1713
        %v1716 = vadd.f32 %v1493, %v1709
        %v1717 = vadd.f32 %v1494, %v1709
        %v1718 = vadd.f32 %v1704, %v1714
        %v1719 = vadd.f32 %v1705, %v1714
        %1720 = vst [vmem:[%s526] sm:$0xff] %v1716
        %1721 = vst [vmem:[%s526 + $0x8] sm:$0xff] %v1717
        %1722 = vst [vmem:[%s526 + $0x10] sm:$0xff] %v1718
        %1723 = vst [vmem:[%s526 + $0x18] sm:$0xff] %v1719
        %s1724 = sand.u32 %s305, 1
        %s1725 = scalar_lea.sflag [#allocation4], %s1724
        %s1726 = sand.u32 %s305, 1
        %s1727 = smul.addr %s1726, 32
        %s1728 = scalar_lea.vmem [#allocation13], %s1727
        // Predicated region
        $region93: #{tpu_custom_call.1} parent=67 // pred_check
          %p1729 = pneg %p315
        $region94: #{tpu_custom_call.1} parent=67 // pred_check_branch
          %1731 = sbr.rel (%p1729) target = $region96
        $region95: #{tpu_custom_call.1} parent=67 // pred_region
          %1733 = vsyncadd %s1725, 0
          %s1734 = smul.addr %s30, 4
          %s1735 = smul.addr %s1734, 8
          %s1736 = scalar_lea.hbm %s12, %s1735
          %s1737 = sshll.u32 %s1728, 4
          %s1738 = int_to_ptr.vmem [resolvable:$true] %s1737
          %s1739 = sshll.u32 %s1736, 4
          %s1740 = int_to_ptr.hbm [resolvable:$true] %s1739
          %1745 = dma.vmem_to_hbm [thread:$0]  %s1738, 512, %s1740, %s1725, 256, 256, 16
        $region96: #{tpu_custom_call.1} parent=67 // pred_fallthru
          _
      $region68: #{tpu_custom_call.1} parent=5 // pred_fallthru
        _
      %p1746 = scmp.le.s32.totalorder 2, %s25
      // Predicated region
      $region97: #{tpu_custom_call.1} parent=5 // pred_check
        %p1747 = pneg %p1746
      $region98: #{tpu_custom_call.1} parent=5 // pred_check_branch
        %1749 = sbr.rel (%p1747) target = $region100
      $region99: #{tpu_custom_call.1} parent=5 // pred_region
        %s1750 = ssub.s32 %s25, 2
        // Predicated region
        $region101: #{tpu_custom_call.1} parent=99 // pred_check
          %p1751 = pneg %p321
        $region102: #{tpu_custom_call.1} parent=99 // pred_check_branch
          %1753 = sbr.rel (%p1751) target = $region104
        $region103: #{tpu_custom_call.1} parent=99 // pred_region
          %s1754 = sand.u32 %s306, 1
          %s1755 = scalar_lea.sflag [#allocation4], %s1754
          %s1756 = sand.u32 %s306, 1
          %s1757 = smul.addr %s1756, 32
          %s1758 = scalar_lea.vmem [#allocation13], %s1757
          %1760 = dma.done %s1755, 512
        $region104: #{tpu_custom_call.1} parent=99 // pred_fallthru
          _
      $region100: #{tpu_custom_call.1} parent=5 // pred_fallthru
        _
    $region6: #{tpu_custom_call.1} parent=1 // loop_footer
      %s29 = sadd.s32 1, %s25
    $region7: #{tpu_custom_call.1} parent=1 // loop_footer_branch
      %24 = sbr.rel target = $region3
    $region8: #{tpu_custom_call.1} parent=1 // loop_exit
      _
    %1761 = vsyncpa [#allocation3], 1
    %s1762 = scalar_lea.sflag [#allocation3], 1
    %1763 = vsyncpa %s1762, 1
    %1764 = vsyncpa [#allocation6], 1
    %1765 = vsyncpa [#allocation9], 1
    %1766 = vsyncpa [#allocation12], 1
    %1767 = vsyncpa [#allocation4], 1
    %s1768 = scalar_lea.sflag [#allocation4], 1
    %1769 = vsyncpa %s1768, 1

</llo_original>
